<compile_context>
chip_gen: v6e
topology: v6e:2x2x1
jax: 0.10.0
libtpu: 0.0.40
codegen_flags: <defaults>
</compile_context>

<pallas_src>
import jax
import jax.numpy as jnp
from jax.experimental import pallas as pl
from jax.experimental.pallas import tpu as pltpu


# Logical (PyTorch) layer sizes and their lane-padded versions.
_DIMS = [(28 * 28, 392), (392, 196), (196, 98), (98, 10)]
_PAD = {392: 512, 196: 256, 98: 128, 10: 128, 28 * 28: 28 * 28}


def _round_up(x, m):
    return ((x + m - 1) // m) * m


def _net_kernel(x_ref, img_ref,
                w1_ref, b1_ref,
                w2_ref, b2_ref,
                w3_ref, b3_ref,
                w4_ref, b4_ref,
                out_ref):
    # x = clamp(x + img, 0, 1)   (img is (1, 784), broadcast over batch tile)
    x = jnp.clip(x_ref[...] + img_ref[...], 0.0, 1.0).astype(jnp.bfloat16)

    # fc1 + relu  (bf16 inputs, f32 accumulation)
    h = jnp.dot(x, w1_ref[...], preferred_element_type=jnp.float32) + b1_ref[...]
    h = jnp.maximum(h, 0.0).astype(jnp.bfloat16)

    # fc2 + relu
    h = jnp.dot(h, w2_ref[...], preferred_element_type=jnp.float32) + b2_ref[...]
    h = jnp.maximum(h, 0.0).astype(jnp.bfloat16)

    # fc3 + relu
    h = jnp.dot(h, w3_ref[...], preferred_element_type=jnp.float32) + b3_ref[...]
    h = jnp.maximum(h, 0.0).astype(jnp.bfloat16)

    # fc4 (no activation) — lane-dense 128-wide store (cols 10..127 are zero).
    out = jnp.dot(h, w4_ref[...], preferred_element_type=jnp.float32) + b4_ref[...]
    out_ref[...] = out.astype(out_ref.dtype)


def net_forward(x, params, *, tb=256):
    """x: (B, 784) f32.  params: img (1,784) f32, w1..w4 bf16 (in_pad,out_pad),
    b1..b4 f32 (1,out_pad).  Returns (B, 10) f32 logits."""
    B, D = x.shape
    assert D == 28 * 28

    # Batch tile: multiple of 8 sublanes, no larger than needed for small B.
    tb = min(tb, _round_up(max(B, 1), 8))
    Bp = _round_up(B, tb)
    if Bp != B:
        x = jnp.pad(x, ((0, Bp - B), (0, 0)))

    n_out = params["w4"].shape[1]  # 128 (padded)
    grid = (Bp // tb,)

    # Weights / biases: constant block index -> fetched once, VMEM-resident.
    def const_spec(arr):
        return pl.BlockSpec(arr.shape, lambda i: (0, 0))

    grid_spec = pltpu.PrefetchScalarGridSpec(
        num_scalar_prefetch=0,
        grid=grid,
        in_specs=[
            pl.BlockSpec((tb, D), lambda i: (i, 0)),      # x tile
            const_spec(params["img"]),
            const_spec(params["w1"]), const_spec(params["b1"]),
            const_spec(params["w2"]), const_spec(params["b2"]),
            const_spec(params["w3"]), const_spec(params["b3"]),
            const_spec(params["w4"]), const_spec(params["b4"]),
        ],
        out_specs=pl.BlockSpec((tb, n_out), lambda i: (i, 0)),
    )

    out_padded = pl.pallas_call(
        _net_kernel,
        out_shape=jax.ShapeDtypeStruct((Bp, n_out), jnp.float32),
        grid_spec=grid_spec,
        compiler_params=pltpu.CompilerParams(
            dimension_semantics=("parallel",),
            vmem_limit_bytes=48 * 1024 * 1024,
        ),
    )(
        x, params["img"],
        params["w1"], params["b1"],
        params["w2"], params["b2"],
        params["w3"], params["b3"],
        params["w4"], params["b4"],
    )

    # Strip batch padding and the zero-padded output columns.
    return out_padded[:B, :10]


def init_params(key):
    """Mirrors nn.Linear default init (uniform +/- 1/sqrt(fan_in)) on the
    logical shapes, then zero-pads to lane-dense widths.  Weights -> bf16."""
    params = {"img": jnp.zeros((1, 28 * 28), jnp.float32)}  # nn.Parameter zeros
    for i, (fan_in, fan_out) in enumerate(_DIMS, start=1):
        key, kw, kb = jax.random.split(key, 3)
        bound = 1.0 / jnp.sqrt(jnp.float32(fan_in))
        w = jax.random.uniform(kw, (fan_in, fan_out), jnp.float32,
                               minval=-bound, maxval=bound)
        b = jax.random.uniform(kb, (1, fan_out), jnp.float32,
                               minval=-bound, maxval=bound)
        in_p, out_p = _PAD[fan_in], _PAD[fan_out]
        w_pad = jnp.zeros((in_p, out_p), jnp.float32).at[:fan_in, :fan_out].set(w)
        b_pad = jnp.zeros((1, out_p), jnp.float32).at[:, :fan_out].set(b)
        params[f"w{i}"] = w_pad.astype(jnp.bfloat16)   # bf16 weights (MXU native)
        params[f"b{i}"] = b_pad                        # f32 bias, added post-accum
    return params


def _ref_forward(x, params):
    """Pure-JAX reference mirroring the kernel's bf16/f32 mixed precision."""
    h = jnp.clip(x + params["img"], 0.0, 1.0).astype(jnp.bfloat16)
    h = jnp.dot(h, params["w1"], preferred_element_type=jnp.float32) + params["b1"]
    h = jnp.maximum(h, 0.0).astype(jnp.bfloat16)
    h = jnp.dot(h, params["w2"], preferred_element_type=jnp.float32) + params["b2"]
    h = jnp.maximum(h, 0.0).astype(jnp.bfloat16)
    h = jnp.dot(h, params["w3"], preferred_element_type=jnp.float32) + params["b3"]
    h = jnp.maximum(h, 0.0).astype(jnp.bfloat16)
    out = jnp.dot(h, params["w4"], preferred_element_type=jnp.float32) + params["b4"]
    return out[:, :10]


if __name__ == "__main__":
    key = jax.random.PRNGKey(0)
    key, kx = jax.random.split(key)

    B = 8
    x = jax.random.uniform(kx, (B, 28 * 28), jnp.float32)  # MNIST-like pixels
    params = init_params(key)

    out = net_forward(x, params)
    out = jax.block_until_ready(out)
    assert out.shape == (B, 10)

    ref = _ref_forward(x, params)
    assert jnp.allclose(out, ref, atol=2e-2, rtol=2e-2), (
        f"max abs err {jnp.max(jnp.abs(out - ref))}")

    print("KERNEL_OK")
</pallas_src>

<mosaic_0001>
module attributes {stable_mosaic.version = 11 : i64} {
  func.func @_net_kernel(%arg0: i32, %arg1: memref<8x784xf32, #tpu.memory_space<vmem>>, %arg2: memref<1x784xf32, #tpu.memory_space<vmem>>, %arg3: memref<784x512xbf16, #tpu.memory_space<vmem>>, %arg4: memref<1x512xf32, #tpu.memory_space<vmem>>, %arg5: memref<512x256xbf16, #tpu.memory_space<vmem>>, %arg6: memref<1x256xf32, #tpu.memory_space<vmem>>, %arg7: memref<256x128xbf16, #tpu.memory_space<vmem>>, %arg8: memref<1x128xf32, #tpu.memory_space<vmem>>, %arg9: memref<128x128xbf16, #tpu.memory_space<vmem>>, %arg10: memref<1x128xf32, #tpu.memory_space<vmem>>, %arg11: memref<8x128xf32, #tpu.memory_space<vmem>>) attributes {dimension_semantics = [#tpu.dimension_semantics<parallel>], iteration_bounds = array<i64: 1>, scalar_prefetch = 0 : i64, scratch_operands = 0 : i64, tpu.core_type = #tpu.core_type<tc>, window_params = [{transform_indices = @transform_0, window_bounds = array<i64: 8, 784>}, {pipeline_mode = #tpu.pipeline_mode<synchronous>, transform_indices = @transform_1, window_bounds = array<i64: 1, 784>}, {pipeline_mode = #tpu.pipeline_mode<synchronous>, transform_indices = @transform_2, window_bounds = array<i64: 784, 512>}, {pipeline_mode = #tpu.pipeline_mode<synchronous>, transform_indices = @transform_3, window_bounds = array<i64: 1, 512>}, {pipeline_mode = #tpu.pipeline_mode<synchronous>, transform_indices = @transform_4, window_bounds = array<i64: 512, 256>}, {pipeline_mode = #tpu.pipeline_mode<synchronous>, transform_indices = @transform_5, window_bounds = array<i64: 1, 256>}, {pipeline_mode = #tpu.pipeline_mode<synchronous>, transform_indices = @transform_6, window_bounds = array<i64: 256, 128>}, {pipeline_mode = #tpu.pipeline_mode<synchronous>, transform_indices = @transform_7, window_bounds = array<i64: 1, 128>}, {pipeline_mode = #tpu.pipeline_mode<synchronous>, transform_indices = @transform_8, window_bounds = array<i64: 128, 128>}, {pipeline_mode = #tpu.pipeline_mode<synchronous>, transform_indices = @transform_9, window_bounds = array<i64: 1, 128>}, {transform_indices = @transform_10, window_bounds = array<i64: 8, 128>}]} {
    %c0 = arith.constant 0 : index
    %c0_0 = arith.constant 0 : index
    %0 = vector.load %arg1[%c0, %c0_0] : memref<8x784xf32, #tpu.memory_space<vmem>>, vector<8x784xf32>
    %c0_1 = arith.constant 0 : index
    %c0_2 = arith.constant 0 : index
    %1 = vector.load %arg2[%c0_1, %c0_2] : memref<1x784xf32, #tpu.memory_space<vmem>>, vector<1x784xf32>
    %2 = vector.broadcast %1 : vector<1x784xf32> to vector<8x784xf32>
    %3 = arith.addf %0, %2 : vector<8x784xf32>
    %cst = arith.constant 0.000000e+00 : f32
    %cst_3 = arith.constant 1.000000e+00 : f32
    %4 = vector.broadcast %cst : f32 to vector<8x784xf32>
    %5 = arith.maximumf %4, %3 : vector<8x784xf32>
    %6 = vector.broadcast %cst_3 : f32 to vector<8x784xf32>
    %7 = arith.minimumf %6, %5 : vector<8x784xf32>
    %8 = arith.truncf %7 : vector<8x784xf32> to vector<8x784xbf16>
    %c0_4 = arith.constant 0 : index
    %c0_5 = arith.constant 0 : index
    %9 = vector.load %arg3[%c0_4, %c0_5] : memref<784x512xbf16, #tpu.memory_space<vmem>>, vector<784x512xbf16>
    %cst_6 = arith.constant dense<0.000000e+00> : vector<8x512xf32>
    %10 = tpu.matmul %8, %9, %cst_6 {dimension_numbers = #tpu.dot_dimension_numbers<[1], [0], [0], [1], [0, 0, 1, 1], [], []>} : vector<8x784xbf16>, vector<784x512xbf16>, vector<8x512xf32> -> vector<8x512xf32>
    %c0_7 = arith.constant 0 : index
    %c0_8 = arith.constant 0 : index
    %11 = vector.load %arg4[%c0_7, %c0_8] : memref<1x512xf32, #tpu.memory_space<vmem>>, vector<1x512xf32>
    %12 = vector.broadcast %11 : vector<1x512xf32> to vector<8x512xf32>
    %13 = arith.addf %10, %12 : vector<8x512xf32>
    %cst_9 = arith.constant 0.000000e+00 : f32
    %14 = vector.broadcast %cst_9 : f32 to vector<8x512xf32>
    %15 = arith.maximumf %13, %14 : vector<8x512xf32>
    %16 = arith.truncf %15 : vector<8x512xf32> to vector<8x512xbf16>
    %c0_10 = arith.constant 0 : index
    %c0_11 = arith.constant 0 : index
    %17 = vector.load %arg5[%c0_10, %c0_11] : memref<512x256xbf16, #tpu.memory_space<vmem>>, vector<512x256xbf16>
    %cst_12 = arith.constant dense<0.000000e+00> : vector<8x256xf32>
    %18 = tpu.matmul %16, %17, %cst_12 {dimension_numbers = #tpu.dot_dimension_numbers<[1], [0], [0], [1], [0, 0, 1, 1], [], []>} : vector<8x512xbf16>, vector<512x256xbf16>, vector<8x256xf32> -> vector<8x256xf32>
    %c0_13 = arith.constant 0 : index
    %c0_14 = arith.constant 0 : index
    %19 = vector.load %arg6[%c0_13, %c0_14] : memref<1x256xf32, #tpu.memory_space<vmem>>, vector<1x256xf32>
    %20 = vector.broadcast %19 : vector<1x256xf32> to vector<8x256xf32>
    %21 = arith.addf %18, %20 : vector<8x256xf32>
    %cst_15 = arith.constant 0.000000e+00 : f32
    %22 = vector.broadcast %cst_15 : f32 to vector<8x256xf32>
    %23 = arith.maximumf %21, %22 : vector<8x256xf32>
    %24 = arith.truncf %23 : vector<8x256xf32> to vector<8x256xbf16>
    %c0_16 = arith.constant 0 : index
    %c0_17 = arith.constant 0 : index
    %25 = vector.load %arg7[%c0_16, %c0_17] : memref<256x128xbf16, #tpu.memory_space<vmem>>, vector<256x128xbf16>
    %cst_18 = arith.constant dense<0.000000e+00> : vector<8x128xf32>
    %26 = tpu.matmul %24, %25, %cst_18 {dimension_numbers = #tpu.dot_dimension_numbers<[1], [0], [0], [1], [0, 0, 1, 1], [], []>} : vector<8x256xbf16>, vector<256x128xbf16>, vector<8x128xf32> -> vector<8x128xf32>
    %c0_19 = arith.constant 0 : index
    %c0_20 = arith.constant 0 : index
    %27 = vector.load %arg8[%c0_19, %c0_20] : memref<1x128xf32, #tpu.memory_space<vmem>>, vector<1x128xf32>
    %28 = vector.broadcast %27 : vector<1x128xf32> to vector<8x128xf32>
    %29 = arith.addf %26, %28 : vector<8x128xf32>
    %cst_21 = arith.constant 0.000000e+00 : f32
    %30 = vector.broadcast %cst_21 : f32 to vector<8x128xf32>
    %31 = arith.maximumf %29, %30 : vector<8x128xf32>
    %32 = arith.truncf %31 : vector<8x128xf32> to vector<8x128xbf16>
    %c0_22 = arith.constant 0 : index
    %c0_23 = arith.constant 0 : index
    %33 = vector.load %arg9[%c0_22, %c0_23] : memref<128x128xbf16, #tpu.memory_space<vmem>>, vector<128x128xbf16>
    %cst_24 = arith.constant dense<0.000000e+00> : vector<8x128xf32>
    %34 = tpu.matmul %32, %33, %cst_24 {dimension_numbers = #tpu.dot_dimension_numbers<[1], [0], [0], [1], [0, 0, 1, 1], [], []>} : vector<8x128xbf16>, vector<128x128xbf16>, vector<8x128xf32> -> vector<8x128xf32>
    %c0_25 = arith.constant 0 : index
    %c0_26 = arith.constant 0 : index
    %35 = vector.load %arg10[%c0_25, %c0_26] : memref<1x128xf32, #tpu.memory_space<vmem>>, vector<1x128xf32>
    %36 = vector.broadcast %35 : vector<1x128xf32> to vector<8x128xf32>
    %37 = arith.addf %34, %36 : vector<8x128xf32>
    %c0_27 = arith.constant 0 : index
    %c0_28 = arith.constant 0 : index
    %38 = vector.load %arg11[%c0_27, %c0_28] : memref<8x128xf32, #tpu.memory_space<vmem>>, vector<8x128xf32>
    tpu.vector_store %arg11[%c0_27, %c0_28], %37 {strides = array<i32>} : memref<8x128xf32, #tpu.memory_space<vmem>>, vector<8x128xf32>,
    return
  }
  func.func @transform_0(%arg0: i32) -> (i32, i32) {
    %c0_i32 = arith.constant 0 : i32
    %c0_i32_0 = arith.constant 0 : i32
    return %arg0, %c0_i32 : i32, i32
  }
  func.func @transform_1(%arg0: i32) -> (i32, i32) {
    %c0_i32 = arith.constant 0 : i32
    %c0_i32_0 = arith.constant 0 : i32
    %c0_i32_1 = arith.constant 0 : i32
    return %c0_i32, %c0_i32_0 : i32, i32
  }
  func.func @transform_2(%arg0: i32) -> (i32, i32) {
    %c0_i32 = arith.constant 0 : i32
    %c0_i32_0 = arith.constant 0 : i32
    %c0_i32_1 = arith.constant 0 : i32
    return %c0_i32, %c0_i32_0 : i32, i32
  }
  func.func @transform_3(%arg0: i32) -> (i32, i32) {
    %c0_i32 = arith.constant 0 : i32
    %c0_i32_0 = arith.constant 0 : i32
    %c0_i32_1 = arith.constant 0 : i32
    return %c0_i32, %c0_i32_0 : i32, i32
  }
  func.func @transform_4(%arg0: i32) -> (i32, i32) {
    %c0_i32 = arith.constant 0 : i32
    %c0_i32_0 = arith.constant 0 : i32
    %c0_i32_1 = arith.constant 0 : i32
    return %c0_i32, %c0_i32_0 : i32, i32
  }
  func.func @transform_5(%arg0: i32) -> (i32, i32) {
    %c0_i32 = arith.constant 0 : i32
    %c0_i32_0 = arith.constant 0 : i32
    %c0_i32_1 = arith.constant 0 : i32
    return %c0_i32, %c0_i32_0 : i32, i32
  }
  func.func @transform_6(%arg0: i32) -> (i32, i32) {
    %c0_i32 = arith.constant 0 : i32
    %c0_i32_0 = arith.constant 0 : i32
    %c0_i32_1 = arith.constant 0 : i32
    return %c0_i32, %c0_i32_0 : i32, i32
  }
  func.func @transform_7(%arg0: i32) -> (i32, i32) {
    %c0_i32 = arith.constant 0 : i32
    %c0_i32_0 = arith.constant 0 : i32
    %c0_i32_1 = arith.constant 0 : i32
    return %c0_i32, %c0_i32_0 : i32, i32
  }
  func.func @transform_8(%arg0: i32) -> (i32, i32) {
    %c0_i32 = arith.constant 0 : i32
    %c0_i32_0 = arith.constant 0 : i32
    %c0_i32_1 = arith.constant 0 : i32
    return %c0_i32, %c0_i32_0 : i32, i32
  }
  func.func @transform_9(%arg0: i32) -> (i32, i32) {
    %c0_i32 = arith.constant 0 : i32
    %c0_i32_0 = arith.constant 0 : i32
    %c0_i32_1 = arith.constant 0 : i32
    return %c0_i32, %c0_i32_0 : i32, i32
  }
  func.func @transform_10(%arg0: i32) -> (i32, i32) {
    %c0_i32 = arith.constant 0 : i32
    %c0_i32_0 = arith.constant 0 : i32
    return %arg0, %c0_i32 : i32, i32
  }
}

</mosaic_0001>

<llo_original>
// kernel: tpu_custom_call.1
$region0: #{tpu_custom_call.1}
  #allocation0 [shape = 'u32[]', space=smem, size = 0x4, offset = 0x4, fixed_abs, tag = 'smem constant byte address 0x4 - core index']
  #allocation1 [shape = 'u32[144,128]{1,0:T(1,128)}', space=vmem, size = 0x12000, scoped, tag = 'internal scratch']
  %s0 = inlined_call_operand.hbm [shape: f32[8,784], index: 0, kind: input, shape index: {}]
  %s1 = inlined_call_operand.hbm [shape: f32[1,784], index: 1, kind: input, shape index: {}]
  %s2 = inlined_call_operand.hbm [shape: bf16[784,512], index: 2, kind: input, shape index: {}]
  %s3 = inlined_call_operand.vmem [shape: f32[1,512], index: 3, kind: input, shape index: {}]
  %s4 = inlined_call_operand.hbm [shape: bf16[512,256], index: 4, kind: input, shape index: {}]
  %s5 = inlined_call_operand.vmem [shape: f32[1,256], index: 5, kind: input, shape index: {}]
  %s6 = inlined_call_operand.hbm [shape: bf16[256,128], index: 6, kind: input, shape index: {}]
  %s7 = inlined_call_operand.vmem [shape: f32[1,128], index: 7, kind: input, shape index: {}]
  %s8 = inlined_call_operand.hbm [shape: bf16[128,128], index: 8, kind: input, shape index: {}]
  %s9 = inlined_call_operand.vmem [shape: f32[1,128], index: 9, kind: input, shape index: {}]
  %s10 = inlined_call_operand.hbm [shape: f32[8,128], index: 10, kind: output, shape index: {}]
  %s11 = sld [smem:[#allocation0]]
  $region74: #{tpu_custom_call.1} parent=0
    _
  %s13 = ssub.s32 1, %s11
  %s14 = scalar_select 0, %s13, %s11
  $region1: #{tpu_custom_call.1} parent=0
    #allocation2 [shape = 'u8[28672]{0}', space=vmem, size = 0x7000, scoped, tag = 'input window, operand 0, single buffered']
    #allocation3 [shape = 's32[1]{0}', space=sflag, size = 0x4, scoped, tag = 'scoped memory for tpu_custom_call.1']
    #allocation4 [shape = 's32[1]{0}', space=sflag, size = 0x4, scoped, tag = 'scoped memory for tpu_custom_call.1']
    #allocation5 [shape = 'u8[3584]{0}', space=vmem, size = 0x1000, scoped, tag = 'input window, operand 1, single buffered']
    #allocation6 [shape = 's32[1]{0}', space=sflag, size = 0x4, scoped, tag = 'scoped memory for tpu_custom_call.1']
    #allocation7 [shape = 'u8[802816]{0}', space=vmem, size = 0xc4000, scoped, tag = 'input window, operand 2, single buffered']
    #allocation8 [shape = 'u8[262144]{0}', space=vmem, size = 0x40000, scoped, tag = 'input window, operand 4, single buffered']
    #allocation9 [shape = 's32[1]{0}', space=sflag, size = 0x4, scoped, tag = 'scoped memory for tpu_custom_call.1']
    #allocation10 [shape = 'u8[65536]{0}', space=vmem, size = 0x10000, scoped, tag = 'input window, operand 6, single buffered']
    #allocation11 [shape = 'u8[32768]{0}', space=vmem, size = 0x8000, scoped, tag = 'input window, operand 8, single buffered']
    #allocation12 [shape = 's32[1]{0}', space=sflag, size = 0x4, scoped, tag = 'scoped memory for tpu_custom_call.1']
    #allocation13 [shape = 'u8[4096]{0}', space=vmem, size = 0x1000, scoped, tag = 'output window, operand 0, single buffered']
    %15 = vsyncpa [#allocation3], 0
    %16 = vsyncpa [#allocation6], 0
    %17 = vsyncpa [#allocation9], 0
    %18 = vsyncpa [#allocation12], 0
    %19 = vsyncpa [#allocation4], 0
    // Predicated region
    $region2: #{tpu_custom_call.1} parent=1 // pred_check
      _
    $region3: #{tpu_custom_call.1} parent=1 // pred_check_branch
      %21 = sbr.rel (0) target = $region5
    $region4: #{tpu_custom_call.1} parent=1 // pred_region
      %s23 = ssub.s32 896, 896
      %24 = vsyncadd [#allocation3], %s23
      %s26 = sshll.u32 [#allocation2], 4
      %s27 = int_to_ptr.vmem [resolvable:$true] %s26
      %29 = dma.hbm_to_vmem [thread:$0]  %s0, 896, %s27, [#allocation3]
    $region5: #{tpu_custom_call.1} parent=1 // pred_fallthru
      _
    // Predicated region
    $region6: #{tpu_custom_call.1} parent=1 // pred_check
      _
    $region7: #{tpu_custom_call.1} parent=1 // pred_check_branch
      %31 = sbr.rel (0) target = $region9
    $region8: #{tpu_custom_call.1} parent=1 // pred_region
      %s33 = ssub.s32 112, 112
      %34 = vsyncadd [#allocation6], %s33
      %s36 = sshll.u32 [#allocation5], 4
      %s37 = int_to_ptr.vmem [resolvable:$true] %s36
      %39 = dma.hbm_to_vmem [thread:$0]  %s1, 112, %s37, [#allocation6]
    $region9: #{tpu_custom_call.1} parent=1 // pred_fallthru
      _
    // Predicated region
    $region10: #{tpu_custom_call.1} parent=1 // pred_check
      _
    $region11: #{tpu_custom_call.1} parent=1 // pred_check_branch
      %41 = sbr.rel (0) target = $region13
    $region12: #{tpu_custom_call.1} parent=1 // pred_region
      %s43 = ssub.s32 25088, 25088
      %44 = vsyncadd [#allocation6], %s43
      %s45 = sshll.u32 [#allocation7], 4
      %s46 = int_to_ptr.vmem [resolvable:$true] %s45
      %51 = dma.hbm_to_vmem [thread:$0]  %s2, 25088, %s46, [#allocation6], 256, 256, 16
    $region13: #{tpu_custom_call.1} parent=1 // pred_fallthru
      _
    // Predicated region
    $region14: #{tpu_custom_call.1} parent=1 // pred_check
      _
    $region15: #{tpu_custom_call.1} parent=1 // pred_check_branch
      %53 = sbr.rel (0) target = $region17
    $region16: #{tpu_custom_call.1} parent=1 // pred_region
      _
    $region17: #{tpu_custom_call.1} parent=1 // pred_fallthru
      _
    // Predicated region
    $region18: #{tpu_custom_call.1} parent=1 // pred_check
      _
    $region19: #{tpu_custom_call.1} parent=1 // pred_check_branch
      %55 = sbr.rel (0) target = $region21
    $region20: #{tpu_custom_call.1} parent=1 // pred_region
      %s57 = ssub.s32 8192, 8192
      %58 = vsyncadd [#allocation9], %s57
      %s59 = sshll.u32 [#allocation8], 4
      %s60 = int_to_ptr.vmem [resolvable:$true] %s59
      %65 = dma.hbm_to_vmem [thread:$0]  %s4, 8192, %s60, [#allocation9], 128, 128, 8
    $region21: #{tpu_custom_call.1} parent=1 // pred_fallthru
      _
    // Predicated region
    $region22: #{tpu_custom_call.1} parent=1 // pred_check
      _
    $region23: #{tpu_custom_call.1} parent=1 // pred_check_branch
      %67 = sbr.rel (0) target = $region25
    $region24: #{tpu_custom_call.1} parent=1 // pred_region
      _
    $region25: #{tpu_custom_call.1} parent=1 // pred_fallthru
      _
    // Predicated region
    $region26: #{tpu_custom_call.1} parent=1 // pred_check
      _
    $region27: #{tpu_custom_call.1} parent=1 // pred_check_branch
      %69 = sbr.rel (0) target = $region29
    $region28: #{tpu_custom_call.1} parent=1 // pred_region
      %s71 = ssub.s32 2048, 2048
      %72 = vsyncadd [#allocation9], %s71
      %s73 = sshll.u32 [#allocation10], 4
      %s74 = int_to_ptr.vmem [resolvable:$true] %s73
      %79 = dma.hbm_to_vmem [thread:$0]  %s6, 2048, %s74, [#allocation9], 64, 64, 4
    $region29: #{tpu_custom_call.1} parent=1 // pred_fallthru
      _
    // Predicated region
    $region30: #{tpu_custom_call.1} parent=1 // pred_check
      _
    $region31: #{tpu_custom_call.1} parent=1 // pred_check_branch
      %81 = sbr.rel (0) target = $region33
    $region32: #{tpu_custom_call.1} parent=1 // pred_region
      _
    $region33: #{tpu_custom_call.1} parent=1 // pred_fallthru
      _
    // Predicated region
    $region34: #{tpu_custom_call.1} parent=1 // pred_check
      _
    $region35: #{tpu_custom_call.1} parent=1 // pred_check_branch
      %83 = sbr.rel (0) target = $region37
    $region36: #{tpu_custom_call.1} parent=1 // pred_region
      %s85 = ssub.s32 1024, 1024
      %86 = vsyncadd [#allocation12], %s85
      %s87 = sshll.u32 [#allocation11], 4
      %s88 = int_to_ptr.vmem [resolvable:$true] %s87
      %93 = dma.hbm_to_vmem [thread:$0]  %s8, 1024, %s88, [#allocation12], 64, 64, 4
    $region37: #{tpu_custom_call.1} parent=1 // pred_fallthru
      _
    // Predicated region
    $region38: #{tpu_custom_call.1} parent=1 // pred_check
      _
    $region39: #{tpu_custom_call.1} parent=1 // pred_check_branch
      %95 = sbr.rel (0) target = $region41
    $region40: #{tpu_custom_call.1} parent=1 // pred_region
      _
    $region41: #{tpu_custom_call.1} parent=1 // pred_fallthru
      _
    // Predicated region
    $region42: #{tpu_custom_call.1} parent=1 // pred_check
      _
    $region43: #{tpu_custom_call.1} parent=1 // pred_check_branch
      %97 = sbr.rel (0) target = $region45
    $region44: #{tpu_custom_call.1} parent=1 // pred_region
      %98 = dma.done [#allocation3], 896
    $region45: #{tpu_custom_call.1} parent=1 // pred_fallthru
      _
    // Predicated region
    $region46: #{tpu_custom_call.1} parent=1 // pred_check
      _
    $region47: #{tpu_custom_call.1} parent=1 // pred_check_branch
      %100 = sbr.rel (0) target = $region49
    $region48: #{tpu_custom_call.1} parent=1 // pred_region
      %101 = dma.done [#allocation6], 112
    $region49: #{tpu_custom_call.1} parent=1 // pred_fallthru
      _
    // Predicated region
    $region50: #{tpu_custom_call.1} parent=1 // pred_check
      _
    $region51: #{tpu_custom_call.1} parent=1 // pred_check_branch
      %103 = sbr.rel (0) target = $region53
    $region52: #{tpu_custom_call.1} parent=1 // pred_region
      %104 = dma.done [#allocation6], 25088
    $region53: #{tpu_custom_call.1} parent=1 // pred_fallthru
      _
    // Predicated region
    $region54: #{tpu_custom_call.1} parent=1 // pred_check
      _
    $region55: #{tpu_custom_call.1} parent=1 // pred_check_branch
      %106 = sbr.rel (0) target = $region57
    $region56: #{tpu_custom_call.1} parent=1 // pred_region
      %107 = dma.done [#allocation9], 8192
    $region57: #{tpu_custom_call.1} parent=1 // pred_fallthru
      _
    // Predicated region
    $region58: #{tpu_custom_call.1} parent=1 // pred_check
      _
    $region59: #{tpu_custom_call.1} parent=1 // pred_check_branch
      %109 = sbr.rel (0) target = $region61
    $region60: #{tpu_custom_call.1} parent=1 // pred_region
      %110 = dma.done [#allocation9], 2048
    $region61: #{tpu_custom_call.1} parent=1 // pred_fallthru
      _
    // Predicated region
    $region62: #{tpu_custom_call.1} parent=1 // pred_check
      _
    $region63: #{tpu_custom_call.1} parent=1 // pred_check_branch
      %112 = sbr.rel (0) target = $region65
    $region64: #{tpu_custom_call.1} parent=1 // pred_region
      %113 = dma.done [#allocation12], 1024
    $region65: #{tpu_custom_call.1} parent=1 // pred_fallthru
      _
    %v115 = vld [vmem:[#allocation2] sm:$0xff]
    %v116 = vld [vmem:[#allocation2 + $0x8] sm:$0xff]
    %v117 = vld [vmem:[#allocation2 + $0x10] sm:$0xff]
    %v118 = vld [vmem:[#allocation2 + $0x18] sm:$0xff]
    %v119 = vld [vmem:[#allocation2 + $0x20] sm:$0xff]
    %v120 = vld [vmem:[#allocation2 + $0x28] sm:$0xff]
    %v121 = vld [vmem:[#allocation2 + $0x30] sm:$0xff]
    %v122 = vld [vmem:[#allocation5] sm:$0x7f]
    %v124 = vlaneseq
    %v125 = vshrl.u32 %v124, 7
    %v126 = vsub.s32 0, %v125
    %v127 = vrot.slane %v122, %v126
    %v128 = vlaneseq
    %v129 = vshrl.u32 %v128, 7
    %v130 = vsub.s32 1, %v129
    %v131 = vrot.slane %v122, %v130
    %v132 = vlaneseq
    %v133 = vshrl.u32 %v132, 7
    %v134 = vsub.s32 2, %v133
    %v135 = vrot.slane %v122, %v134
    %v136 = vlaneseq
    %v137 = vshrl.u32 %v136, 7
    %v138 = vsub.s32 3, %v137
    %v139 = vrot.slane %v122, %v138
    %v140 = vlaneseq
    %v141 = vshrl.u32 %v140, 7
    %v142 = vsub.s32 4, %v141
    %v143 = vrot.slane %v122, %v142
    %v144 = vlaneseq
    %v145 = vshrl.u32 %v144, 7
    %v146 = vsub.s32 5, %v145
    %v147 = vrot.slane %v122, %v146
    %v148 = vlaneseq
    %v149 = vshrl.u32 %v148, 7
    %v150 = vsub.s32 6, %v149
    %v151 = vrot.slane %v122, %v150
    %v159 = vadd.f32 %v115, %v127
    %v160 = vadd.f32 %v116, %v131
    %v161 = vadd.f32 %v117, %v135
    %v162 = vadd.f32 %v118, %v139
    %v163 = vadd.f32 %v119, %v143
    %v164 = vadd.f32 %v120, %v147
    %v165 = vadd.f32 %v121, %v151
    %v166 = vmax.f32 %v159, 0.0
    %v167 = vmax.f32 %v160, 0.0
    %v168 = vmax.f32 %v161, 0.0
    %v169 = vmax.f32 %v162, 0.0
    %v170 = vmax.f32 %v163, 0.0
    %v171 = vmax.f32 %v164, 0.0
    %v172 = vmax.f32 %v165, 0.0
    %v173 = vmin.f32 %v166, 1.0
    %v174 = vmin.f32 %v167, 1.0
    %v175 = vmin.f32 %v168, 1.0
    %v176 = vmin.f32 %v169, 1.0
    %v177 = vmin.f32 %v170, 1.0
    %v178 = vmin.f32 %v171, 1.0
    %v179 = vmin.f32 %v172, 1.0
    %v180 = vpack.c.bf16 %v173, %v173
    %v181 = vpack.c.bf16 %v174, %v174
    %v182 = vpack.c.bf16 %v175, %v175
    %v183 = vpack.c.bf16 %v176, %v176
    %v184 = vpack.c.bf16 %v177, %v177
    %v185 = vpack.c.bf16 %v178, %v178
    %v186 = vpack.c.bf16 %v179, %v179
    %v187 = vld [vmem:[#allocation7] sm:$0xff]
    %v188 = vld [vmem:[#allocation7 + $0x8] sm:$0xff]
    %v189 = vld [vmem:[#allocation7 + $0x10] sm:$0xff]
    %v190 = vld [vmem:[#allocation7 + $0x18] sm:$0xff]
    %v191 = vld [vmem:[#allocation7 + $0x20] sm:$0xff]
    %v192 = vld [vmem:[#allocation7 + $0x28] sm:$0xff]
    %v193 = vld [vmem:[#allocation7 + $0x30] sm:$0xff]
    %v194 = vld [vmem:[#allocation7 + $0x38] sm:$0xff]
    %v195 = vld [vmem:[#allocation7 + $0x40] sm:$0xff]
    %v196 = vld [vmem:[#allocation7 + $0x48] sm:$0xff]
    %v197 = vld [vmem:[#allocation7 + $0x50] sm:$0xff]
    %v198 = vld [vmem:[#allocation7 + $0x58] sm:$0xff]
    %v199 = vld [vmem:[#allocation7 + $0x60] sm:$0xff]
    %v200 = vld [vmem:[#allocation7 + $0x68] sm:$0xff]
    %v201 = vld [vmem:[#allocation7 + $0x70] sm:$0xff]
    %v202 = vld [vmem:[#allocation7 + $0x78] sm:$0xff]
    %v203 = vld [vmem:[#allocation7 + $0x80] sm:$0xff]
    %v204 = vld [vmem:[#allocation7 + $0x88] sm:$0xff]
    %v205 = vld [vmem:[#allocation7 + $0x90] sm:$0xff]
    %v206 = vld [vmem:[#allocation7 + $0x98] sm:$0xff]
    %v207 = vld [vmem:[#allocation7 + $0xa0] sm:$0xff]
    %v208 = vld [vmem:[#allocation7 + $0xa8] sm:$0xff]
    %v209 = vld [vmem:[#allocation7 + $0xb0] sm:$0xff]
    %v210 = vld [vmem:[#allocation7 + $0xb8] sm:$0xff]
    %v211 = vld [vmem:[#allocation7 + $0xc0] sm:$0xff]
    %v212 = vld [vmem:[#allocation7 + $0xc8] sm:$0xff]
    %v213 = vld [vmem:[#allocation7 + $0xd0] sm:$0xff]
    %v214 = vld [vmem:[#allocation7 + $0xd8] sm:$0xff]
    %v215 = vld [vmem:[#allocation7 + $0xe0] sm:$0xff]
    %v216 = vld [vmem:[#allocation7 + $0xe8] sm:$0xff]
    %v217 = vld [vmem:[#allocation7 + $0xf0] sm:$0xff]
    %v218 = vld [vmem:[#allocation7 + $0xf8] sm:$0xff]
    %v219 = vld [vmem:[#allocation7 + $0x100] sm:$0xff]
    %v220 = vld [vmem:[#allocation7 + $0x108] sm:$0xff]
    %v221 = vld [vmem:[#allocation7 + $0x110] sm:$0xff]
    %v222 = vld [vmem:[#allocation7 + $0x118] sm:$0xff]
    %v223 = vld [vmem:[#allocation7 + $0x120] sm:$0xff]
    %v224 = vld [vmem:[#allocation7 + $0x128] sm:$0xff]
    %v225 = vld [vmem:[#allocation7 + $0x130] sm:$0xff]
    %v226 = vld [vmem:[#allocation7 + $0x138] sm:$0xff]
    %v227 = vld [vmem:[#allocation7 + $0x140] sm:$0xff]
    %v228 = vld [vmem:[#allocation7 + $0x148] sm:$0xff]
    %v229 = vld [vmem:[#allocation7 + $0x150] sm:$0xff]
    %v230 = vld [vmem:[#allocation7 + $0x158] sm:$0xff]
    %v231 = vld [vmem:[#allocation7 + $0x160] sm:$0xff]
    %v232 = vld [vmem:[#allocation7 + $0x168] sm:$0xff]
    %v233 = vld [vmem:[#allocation7 + $0x170] sm:$0xff]
    %v234 = vld [vmem:[#allocation7 + $0x178] sm:$0xff]
    %v235 = vld [vmem:[#allocation7 + $0x180] sm:$0xff]
    %v236 = vld [vmem:[#allocation7 + $0x188] sm:$0xff]
    %v237 = vld [vmem:[#allocation7 + $0x190] sm:$0xff]
    %v238 = vld [vmem:[#allocation7 + $0x198] sm:$0xff]
    %v239 = vld [vmem:[#allocation7 + $0x1a0] sm:$0xff]
    %v240 = vld [vmem:[#allocation7 + $0x1a8] sm:$0xff]
    %v241 = vld [vmem:[#allocation7 + $0x1b0] sm:$0xff]
    %v242 = vld [vmem:[#allocation7 + $0x1b8] sm:$0xff]
    %v243 = vld [vmem:[#allocation7 + $0x1c0] sm:$0xff]
    %v244 = vld [vmem:[#allocation7 + $0x1c8] sm:$0xff]
    %v245 = vld [vmem:[#allocation7 + $0x1d0] sm:$0xff]
    %v246 = vld [vmem:[#allocation7 + $0x1d8] sm:$0xff]
    %v247 = vld [vmem:[#allocation7 + $0x1e0] sm:$0xff]
    %v248 = vld [vmem:[#allocation7 + $0x1e8] sm:$0xff]
    %v249 = vld [vmem:[#allocation7 + $0x1f0] sm:$0xff]
    %v250 = vld [vmem:[#allocation7 + $0x1f8] sm:$0xff]
    %v251 = vld [vmem:[#allocation7 + $0x200] sm:$0xff]
    %v252 = vld [vmem:[#allocation7 + $0x208] sm:$0xff]
    %v253 = vld [vmem:[#allocation7 + $0x210] sm:$0xff]
    %v254 = vld [vmem:[#allocation7 + $0x218] sm:$0xff]
    %v255 = vld [vmem:[#allocation7 + $0x220] sm:$0xff]
    %v256 = vld [vmem:[#allocation7 + $0x228] sm:$0xff]
    %v257 = vld [vmem:[#allocation7 + $0x230] sm:$0xff]
    %v258 = vld [vmem:[#allocation7 + $0x238] sm:$0xff]
    %v259 = vld [vmem:[#allocation7 + $0x240] sm:$0xff]
    %v260 = vld [vmem:[#allocation7 + $0x248] sm:$0xff]
    %v261 = vld [vmem:[#allocation7 + $0x250] sm:$0xff]
    %v262 = vld [vmem:[#allocation7 + $0x258] sm:$0xff]
    %v263 = vld [vmem:[#allocation7 + $0x260] sm:$0xff]
    %v264 = vld [vmem:[#allocation7 + $0x268] sm:$0xff]
    %v265 = vld [vmem:[#allocation7 + $0x270] sm:$0xff]
    %v266 = vld [vmem:[#allocation7 + $0x278] sm:$0xff]
    %v267 = vld [vmem:[#allocation7 + $0x280] sm:$0xff]
    %v268 = vld [vmem:[#allocation7 + $0x288] sm:$0xff]
    %v269 = vld [vmem:[#allocation7 + $0x290] sm:$0xff]
    %v270 = vld [vmem:[#allocation7 + $0x298] sm:$0xff]
    %v271 = vld [vmem:[#allocation7 + $0x2a0] sm:$0xff]
    %v272 = vld [vmem:[#allocation7 + $0x2a8] sm:$0xff]
    %v273 = vld [vmem:[#allocation7 + $0x2b0] sm:$0xff]
    %v274 = vld [vmem:[#allocation7 + $0x2b8] sm:$0xff]
    %v275 = vld [vmem:[#allocation7 + $0x2c0] sm:$0xff]
    %v276 = vld [vmem:[#allocation7 + $0x2c8] sm:$0xff]
    %v277 = vld [vmem:[#allocation7 + $0x2d0] sm:$0xff]
    %v278 = vld [vmem:[#allocation7 + $0x2d8] sm:$0xff]
    %v279 = vld [vmem:[#allocation7 + $0x2e0] sm:$0xff]
    %v280 = vld [vmem:[#allocation7 + $0x2e8] sm:$0xff]
    %v281 = vld [vmem:[#allocation7 + $0x2f0] sm:$0xff]
    %v282 = vld [vmem:[#allocation7 + $0x2f8] sm:$0xff]
    %v283 = vld [vmem:[#allocation7 + $0x300] sm:$0xff]
    %v284 = vld [vmem:[#allocation7 + $0x308] sm:$0xff]
    %v285 = vld [vmem:[#allocation7 + $0x310] sm:$0xff]
    %v286 = vld [vmem:[#allocation7 + $0x318] sm:$0xff]
    %v287 = vld [vmem:[#allocation7 + $0x320] sm:$0xff]
    %v288 = vld [vmem:[#allocation7 + $0x328] sm:$0xff]
    %v289 = vld [vmem:[#allocation7 + $0x330] sm:$0xff]
    %v290 = vld [vmem:[#allocation7 + $0x338] sm:$0xff]
    %v291 = vld [vmem:[#allocation7 + $0x340] sm:$0xff]
    %v292 = vld [vmem:[#allocation7 + $0x348] sm:$0xff]
    %v293 = vld [vmem:[#allocation7 + $0x350] sm:$0xff]
    %v294 = vld [vmem:[#allocation7 + $0x358] sm:$0xff]
    %v295 = vld [vmem:[#allocation7 + $0x360] sm:$0xff]
    %v296 = vld [vmem:[#allocation7 + $0x368] sm:$0xff]
    %v297 = vld [vmem:[#allocation7 + $0x370] sm:$0xff]
    %v298 = vld [vmem:[#allocation7 + $0x378] sm:$0xff]
    %v299 = vld [vmem:[#allocation7 + $0x380] sm:$0xff]
    %v300 = vld [vmem:[#allocation7 + $0x388] sm:$0xff]
    %v301 = vld [vmem:[#allocation7 + $0x390] sm:$0xff]
    %v302 = vld [vmem:[#allocation7 + $0x398] sm:$0xff]
    %v303 = vld [vmem:[#allocation7 + $0x3a0] sm:$0xff]
    %v304 = vld [vmem:[#allocation7 + $0x3a8] sm:$0xff]
    %v305 = vld [vmem:[#allocation7 + $0x3b0] sm:$0xff]
    %v306 = vld [vmem:[#allocation7 + $0x3b8] sm:$0xff]
    %v307 = vld [vmem:[#allocation7 + $0x3c0] sm:$0xff]
    %v308 = vld [vmem:[#allocation7 + $0x3c8] sm:$0xff]
    %v309 = vld [vmem:[#allocation7 + $0x3d0] sm:$0xff]
    %v310 = vld [vmem:[#allocation7 + $0x3d8] sm:$0xff]
    %v311 = vld [vmem:[#allocation7 + $0x3e0] sm:$0xff]
    %v312 = vld [vmem:[#allocation7 + $0x3e8] sm:$0xff]
    %v313 = vld [vmem:[#allocation7 + $0x3f0] sm:$0xff]
    %v314 = vld [vmem:[#allocation7 + $0x3f8] sm:$0xff]
    %v315 = vld [vmem:[#allocation7 + $0x400] sm:$0xff]
    %v316 = vld [vmem:[#allocation7 + $0x408] sm:$0xff]
    %v317 = vld [vmem:[#allocation7 + $0x410] sm:$0xff]
    %v318 = vld [vmem:[#allocation7 + $0x418] sm:$0xff]
    %v319 = vld [vmem:[#allocation7 + $0x420] sm:$0xff]
    %v320 = vld [vmem:[#allocation7 + $0x428] sm:$0xff]
    %v321 = vld [vmem:[#allocation7 + $0x430] sm:$0xff]
    %v322 = vld [vmem:[#allocation7 + $0x438] sm:$0xff]
    %v323 = vld [vmem:[#allocation7 + $0x440] sm:$0xff]
    %v324 = vld [vmem:[#allocation7 + $0x448] sm:$0xff]
    %v325 = vld [vmem:[#allocation7 + $0x450] sm:$0xff]
    %v326 = vld [vmem:[#allocation7 + $0x458] sm:$0xff]
    %v327 = vld [vmem:[#allocation7 + $0x460] sm:$0xff]
    %v328 = vld [vmem:[#allocation7 + $0x468] sm:$0xff]
    %v329 = vld [vmem:[#allocation7 + $0x470] sm:$0xff]
    %v330 = vld [vmem:[#allocation7 + $0x478] sm:$0xff]
    %v331 = vld [vmem:[#allocation7 + $0x480] sm:$0xff]
    %v332 = vld [vmem:[#allocation7 + $0x488] sm:$0xff]
    %v333 = vld [vmem:[#allocation7 + $0x490] sm:$0xff]
    %v334 = vld [vmem:[#allocation7 + $0x498] sm:$0xff]
    %v335 = vld [vmem:[#allocation7 + $0x4a0] sm:$0xff]
    %v336 = vld [vmem:[#allocation7 + $0x4a8] sm:$0xff]
    %v337 = vld [vmem:[#allocation7 + $0x4b0] sm:$0xff]
    %v338 = vld [vmem:[#allocation7 + $0x4b8] sm:$0xff]
    %v339 = vld [vmem:[#allocation7 + $0x4c0] sm:$0xff]
    %v340 = vld [vmem:[#allocation7 + $0x4c8] sm:$0xff]
    %v341 = vld [vmem:[#allocation7 + $0x4d0] sm:$0xff]
    %v342 = vld [vmem:[#allocation7 + $0x4d8] sm:$0xff]
    %v343 = vld [vmem:[#allocation7 + $0x4e0] sm:$0xff]
    %v344 = vld [vmem:[#allocation7 + $0x4e8] sm:$0xff]
    %v345 = vld [vmem:[#allocation7 + $0x4f0] sm:$0xff]
    %v346 = vld [vmem:[#allocation7 + $0x4f8] sm:$0xff]
    %v347 = vld [vmem:[#allocation7 + $0x500] sm:$0xff]
    %v348 = vld [vmem:[#allocation7 + $0x508] sm:$0xff]
    %v349 = vld [vmem:[#allocation7 + $0x510] sm:$0xff]
    %v350 = vld [vmem:[#allocation7 + $0x518] sm:$0xff]
    %v351 = vld [vmem:[#allocation7 + $0x520] sm:$0xff]
    %v352 = vld [vmem:[#allocation7 + $0x528] sm:$0xff]
    %v353 = vld [vmem:[#allocation7 + $0x530] sm:$0xff]
    %v354 = vld [vmem:[#allocation7 + $0x538] sm:$0xff]
    %v355 = vld [vmem:[#allocation7 + $0x540] sm:$0xff]
    %v356 = vld [vmem:[#allocation7 + $0x548] sm:$0xff]
    %v357 = vld [vmem:[#allocation7 + $0x550] sm:$0xff]
    %v358 = vld [vmem:[#allocation7 + $0x558] sm:$0xff]
    %v359 = vld [vmem:[#allocation7 + $0x560] sm:$0xff]
    %v360 = vld [vmem:[#allocation7 + $0x568] sm:$0xff]
    %v361 = vld [vmem:[#allocation7 + $0x570] sm:$0xff]
    %v362 = vld [vmem:[#allocation7 + $0x578] sm:$0xff]
    %v363 = vld [vmem:[#allocation7 + $0x580] sm:$0xff]
    %v364 = vld [vmem:[#allocation7 + $0x588] sm:$0xff]
    %v365 = vld [vmem:[#allocation7 + $0x590] sm:$0xff]
    %v366 = vld [vmem:[#allocation7 + $0x598] sm:$0xff]
    %v367 = vld [vmem:[#allocation7 + $0x5a0] sm:$0xff]
    %v368 = vld [vmem:[#allocation7 + $0x5a8] sm:$0xff]
    %v369 = vld [vmem:[#allocation7 + $0x5b0] sm:$0xff]
    %v370 = vld [vmem:[#allocation7 + $0x5b8] sm:$0xff]
    %v371 = vld [vmem:[#allocation7 + $0x5c0] sm:$0xff]
    %v372 = vld [vmem:[#allocation7 + $0x5c8] sm:$0xff]
    %v373 = vld [vmem:[#allocation7 + $0x5d0] sm:$0xff]
    %v374 = vld [vmem:[#allocation7 + $0x5d8] sm:$0xff]
    %v375 = vld [vmem:[#allocation7 + $0x5e0] sm:$0xff]
    %v376 = vld [vmem:[#allocation7 + $0x5e8] sm:$0xff]
    %v377 = vld [vmem:[#allocation7 + $0x5f0] sm:$0xff]
    %v378 = vld [vmem:[#allocation7 + $0x5f8] sm:$0xff]
    %v379 = vld [vmem:[#allocation7 + $0x600] sm:$0xff]
    %v380 = vld [vmem:[#allocation7 + $0x608] sm:$0xff]
    %v381 = vld [vmem:[#allocation7 + $0x610] sm:$0xff]
    %v382 = vld [vmem:[#allocation7 + $0x618] sm:$0xff]
    %v383 = vld [vmem:[%s3] sm:$0xf]
    %v385 = vlaneseq
    %v386 = vshrl.u32 %v385, 7
    %v387 = vsub.s32 0, %v386
    %v388 = vrot.slane %v383, %v387
    %v389 = vlaneseq
    %v390 = vshrl.u32 %v389, 7
    %v391 = vsub.s32 1, %v390
    %v392 = vrot.slane %v383, %v391
    %v393 = vlaneseq
    %v394 = vshrl.u32 %v393, 7
    %v395 = vsub.s32 2, %v394
    %v396 = vrot.slane %v383, %v395
    %v397 = vlaneseq
    %v398 = vshrl.u32 %v397, 7
    %v399 = vsub.s32 3, %v398
    %v400 = vrot.slane %v383, %v399
    %v601 = vunpack.c.l.b16 %v187
    %v602 = vunpack.c.h.b16 %v187
    %v603 = vunpack.c.l.b16 %v188
    %v604 = vunpack.c.h.b16 %v188
    %v605 = vunpack.c.l.b16 %v189
    %v606 = vunpack.c.h.b16 %v189
    %v607 = vunpack.c.l.b16 %v190
    %v608 = vunpack.c.h.b16 %v190
    %v609 = vunpack.c.l.b16 %v191
    %v610 = vunpack.c.h.b16 %v191
    %v611 = vunpack.c.l.b16 %v192
    %v612 = vunpack.c.h.b16 %v192
    %v613 = vunpack.c.l.b16 %v193
    %v614 = vunpack.c.h.b16 %v193
    %v615 = vunpack.c.l.b16 %v194
    %v616 = vunpack.c.h.b16 %v194
    %v617 = vunpack.c.l.b16 %v195
    %v618 = vunpack.c.h.b16 %v195
    %v619 = vunpack.c.l.b16 %v196
    %v620 = vunpack.c.h.b16 %v196
    %v621 = vunpack.c.l.b16 %v197
    %v622 = vunpack.c.h.b16 %v197
    %v623 = vunpack.c.l.b16 %v198
    %v624 = vunpack.c.h.b16 %v198
    %v625 = vunpack.c.l.b16 %v199
    %v626 = vunpack.c.h.b16 %v199
    %v627 = vunpack.c.l.b16 %v200
    %v628 = vunpack.c.h.b16 %v200
    %v629 = vunpack.c.l.b16 %v201
    %v630 = vunpack.c.h.b16 %v201
    %v631 = vunpack.c.l.b16 %v202
    %v632 = vunpack.c.h.b16 %v202
    %v633 = vunpack.c.l.b16 %v203
    %v634 = vunpack.c.h.b16 %v203
    %v635 = vunpack.c.l.b16 %v204
    %v636 = vunpack.c.h.b16 %v204
    %v637 = vunpack.c.l.b16 %v205
    %v638 = vunpack.c.h.b16 %v205
    %v639 = vunpack.c.l.b16 %v206
    %v640 = vunpack.c.h.b16 %v206
    %v641 = vunpack.c.l.b16 %v207
    %v642 = vunpack.c.h.b16 %v207
    %v643 = vunpack.c.l.b16 %v208
    %v644 = vunpack.c.h.b16 %v208
    %v645 = vunpack.c.l.b16 %v209
    %v646 = vunpack.c.h.b16 %v209
    %v647 = vunpack.c.l.b16 %v210
    %v648 = vunpack.c.h.b16 %v210
    %v649 = vunpack.c.l.b16 %v211
    %v650 = vunpack.c.h.b16 %v211
    %v651 = vunpack.c.l.b16 %v212
    %v652 = vunpack.c.h.b16 %v212
    %v653 = vunpack.c.l.b16 %v213
    %v654 = vunpack.c.h.b16 %v213
    %v655 = vunpack.c.l.b16 %v214
    %v656 = vunpack.c.h.b16 %v214
    %v657 = vunpack.c.l.b16 %v215
    %v658 = vunpack.c.h.b16 %v215
    %v659 = vunpack.c.l.b16 %v216
    %v660 = vunpack.c.h.b16 %v216
    %v661 = vunpack.c.l.b16 %v217
    %v662 = vunpack.c.h.b16 %v217
    %v663 = vunpack.c.l.b16 %v218
    %v664 = vunpack.c.h.b16 %v218
    %v665 = vunpack.c.l.b16 %v219
    %v666 = vunpack.c.h.b16 %v219
    %v667 = vunpack.c.l.b16 %v220
    %v668 = vunpack.c.h.b16 %v220
    %v669 = vunpack.c.l.b16 %v221
    %v670 = vunpack.c.h.b16 %v221
    %v671 = vunpack.c.l.b16 %v222
    %v672 = vunpack.c.h.b16 %v222
    %v673 = vunpack.c.l.b16 %v223
    %v674 = vunpack.c.h.b16 %v223
    %v675 = vunpack.c.l.b16 %v224
    %v676 = vunpack.c.h.b16 %v224
    %v677 = vunpack.c.l.b16 %v225
    %v678 = vunpack.c.h.b16 %v225
    %v679 = vunpack.c.l.b16 %v226
    %v680 = vunpack.c.h.b16 %v226
    %v681 = vunpack.c.l.b16 %v227
    %v682 = vunpack.c.h.b16 %v227
    %v683 = vunpack.c.l.b16 %v228
    %v684 = vunpack.c.h.b16 %v228
    %v685 = vunpack.c.l.b16 %v229
    %v686 = vunpack.c.h.b16 %v229
    %v687 = vunpack.c.l.b16 %v230
    %v688 = vunpack.c.h.b16 %v230
    %v689 = vunpack.c.l.b16 %v231
    %v690 = vunpack.c.h.b16 %v231
    %v691 = vunpack.c.l.b16 %v232
    %v692 = vunpack.c.h.b16 %v232
    %v693 = vunpack.c.l.b16 %v233
    %v694 = vunpack.c.h.b16 %v233
    %v695 = vunpack.c.l.b16 %v234
    %v696 = vunpack.c.h.b16 %v234
    %v697 = vunpack.c.l.b16 %v235
    %v698 = vunpack.c.h.b16 %v235
    %v699 = vunpack.c.l.b16 %v236
    %v700 = vunpack.c.h.b16 %v236
    %v701 = vunpack.c.l.b16 %v237
    %v702 = vunpack.c.h.b16 %v237
    %v703 = vunpack.c.l.b16 %v238
    %v704 = vunpack.c.h.b16 %v238
    %v705 = vunpack.c.l.b16 %v239
    %v706 = vunpack.c.h.b16 %v239
    %v707 = vunpack.c.l.b16 %v240
    %v708 = vunpack.c.h.b16 %v240
    %v709 = vunpack.c.l.b16 %v241
    %v710 = vunpack.c.h.b16 %v241
    %v711 = vunpack.c.l.b16 %v242
    %v712 = vunpack.c.h.b16 %v242
    %v713 = vunpack.c.l.b16 %v243
    %v714 = vunpack.c.h.b16 %v243
    %v715 = vunpack.c.l.b16 %v244
    %v716 = vunpack.c.h.b16 %v244
    %v717 = vunpack.c.l.b16 %v245
    %v718 = vunpack.c.h.b16 %v245
    %v719 = vunpack.c.l.b16 %v246
    %v720 = vunpack.c.h.b16 %v246
    %v721 = vunpack.c.l.b16 %v247
    %v722 = vunpack.c.h.b16 %v247
    %v723 = vunpack.c.l.b16 %v248
    %v724 = vunpack.c.h.b16 %v248
    %v725 = vunpack.c.l.b16 %v249
    %v726 = vunpack.c.h.b16 %v249
    %v727 = vunpack.c.l.b16 %v250
    %v728 = vunpack.c.h.b16 %v250
    %v729 = vunpack.c.l.b16 %v251
    %v730 = vunpack.c.h.b16 %v251
    %v731 = vunpack.c.l.b16 %v252
    %v732 = vunpack.c.h.b16 %v252
    %v733 = vunpack.c.l.b16 %v253
    %v734 = vunpack.c.h.b16 %v253
    %v735 = vunpack.c.l.b16 %v254
    %v736 = vunpack.c.h.b16 %v254
    %v737 = vunpack.c.l.b16 %v255
    %v738 = vunpack.c.h.b16 %v255
    %v739 = vunpack.c.l.b16 %v256
    %v740 = vunpack.c.h.b16 %v256
    %v741 = vunpack.c.l.b16 %v257
    %v742 = vunpack.c.h.b16 %v257
    %v743 = vunpack.c.l.b16 %v258
    %v744 = vunpack.c.h.b16 %v258
    %v745 = vunpack.c.l.b16 %v259
    %v746 = vunpack.c.h.b16 %v259
    %v747 = vunpack.c.l.b16 %v260
    %v748 = vunpack.c.h.b16 %v260
    %v749 = vunpack.c.l.b16 %v261
    %v750 = vunpack.c.h.b16 %v261
    %v751 = vunpack.c.l.b16 %v262
    %v752 = vunpack.c.h.b16 %v262
    %v753 = vunpack.c.l.b16 %v263
    %v754 = vunpack.c.h.b16 %v263
    %v755 = vunpack.c.l.b16 %v264
    %v756 = vunpack.c.h.b16 %v264
    %v757 = vunpack.c.l.b16 %v265
    %v758 = vunpack.c.h.b16 %v265
    %v759 = vunpack.c.l.b16 %v266
    %v760 = vunpack.c.h.b16 %v266
    %v761 = vunpack.c.l.b16 %v267
    %v762 = vunpack.c.h.b16 %v267
    %v763 = vunpack.c.l.b16 %v268
    %v764 = vunpack.c.h.b16 %v268
    %v765 = vunpack.c.l.b16 %v269
    %v766 = vunpack.c.h.b16 %v269
    %v767 = vunpack.c.l.b16 %v270
    %v768 = vunpack.c.h.b16 %v270
    %v769 = vunpack.c.l.b16 %v271
    %v770 = vunpack.c.h.b16 %v271
    %v771 = vunpack.c.l.b16 %v272
    %v772 = vunpack.c.h.b16 %v272
    %v773 = vunpack.c.l.b16 %v273
    %v774 = vunpack.c.h.b16 %v273
    %v775 = vunpack.c.l.b16 %v274
    %v776 = vunpack.c.h.b16 %v274
    %v777 = vunpack.c.l.b16 %v275
    %v778 = vunpack.c.h.b16 %v275
    %v779 = vunpack.c.l.b16 %v276
    %v780 = vunpack.c.h.b16 %v276
    %v781 = vunpack.c.l.b16 %v277
    %v782 = vunpack.c.h.b16 %v277
    %v783 = vunpack.c.l.b16 %v278
    %v784 = vunpack.c.h.b16 %v278
    %v785 = vunpack.c.l.b16 %v279
    %v786 = vunpack.c.h.b16 %v279
    %v787 = vunpack.c.l.b16 %v280
    %v788 = vunpack.c.h.b16 %v280
    %v789 = vunpack.c.l.b16 %v281
    %v790 = vunpack.c.h.b16 %v281
    %v791 = vunpack.c.l.b16 %v282
    %v792 = vunpack.c.h.b16 %v282
    %v793 = vunpack.c.l.b16 %v283
    %v794 = vunpack.c.h.b16 %v283
    %v795 = vunpack.c.l.b16 %v284
    %v796 = vunpack.c.h.b16 %v284
    %v797 = vunpack.c.l.b16 %v285
    %v798 = vunpack.c.h.b16 %v285
    %v799 = vunpack.c.l.b16 %v286
    %v800 = vunpack.c.h.b16 %v286
    %v801 = vunpack.c.l.b16 %v287
    %v802 = vunpack.c.h.b16 %v287
    %v803 = vunpack.c.l.b16 %v288
    %v804 = vunpack.c.h.b16 %v288
    %v805 = vunpack.c.l.b16 %v289
    %v806 = vunpack.c.h.b16 %v289
    %v807 = vunpack.c.l.b16 %v290
    %v808 = vunpack.c.h.b16 %v290
    %v809 = vunpack.c.l.b16 %v291
    %v810 = vunpack.c.h.b16 %v291
    %v811 = vunpack.c.l.b16 %v292
    %v812 = vunpack.c.h.b16 %v292
    %v813 = vunpack.c.l.b16 %v293
    %v814 = vunpack.c.h.b16 %v293
    %v815 = vunpack.c.l.b16 %v294
    %v816 = vunpack.c.h.b16 %v294
    %v817 = vunpack.c.l.b16 %v295
    %v818 = vunpack.c.h.b16 %v295
    %v819 = vunpack.c.l.b16 %v296
    %v820 = vunpack.c.h.b16 %v296
    %v821 = vunpack.c.l.b16 %v297
    %v822 = vunpack.c.h.b16 %v297
    %v823 = vunpack.c.l.b16 %v298
    %v824 = vunpack.c.h.b16 %v298
    %v825 = vunpack.c.l.b16 %v299
    %v826 = vunpack.c.h.b16 %v299
    %v827 = vunpack.c.l.b16 %v300
    %v828 = vunpack.c.h.b16 %v300
    %v829 = vunpack.c.l.b16 %v301
    %v830 = vunpack.c.h.b16 %v301
    %v831 = vunpack.c.l.b16 %v302
    %v832 = vunpack.c.h.b16 %v302
    %v833 = vunpack.c.l.b16 %v303
    %v834 = vunpack.c.h.b16 %v303
    %v835 = vunpack.c.l.b16 %v304
    %v836 = vunpack.c.h.b16 %v304
    %v837 = vunpack.c.l.b16 %v305
    %v838 = vunpack.c.h.b16 %v305
    %v839 = vunpack.c.l.b16 %v306
    %v840 = vunpack.c.h.b16 %v306
    %v841 = vunpack.c.l.b16 %v307
    %v842 = vunpack.c.h.b16 %v307
    %v843 = vunpack.c.l.b16 %v308
    %v844 = vunpack.c.h.b16 %v308
    %v845 = vunpack.c.l.b16 %v309
    %v846 = vunpack.c.h.b16 %v309
    %v847 = vunpack.c.l.b16 %v310
    %v848 = vunpack.c.h.b16 %v310
    %v849 = vunpack.c.l.b16 %v311
    %v850 = vunpack.c.h.b16 %v311
    %v851 = vunpack.c.l.b16 %v312
    %v852 = vunpack.c.h.b16 %v312
    %v853 = vunpack.c.l.b16 %v313
    %v854 = vunpack.c.h.b16 %v313
    %v855 = vunpack.c.l.b16 %v314
    %v856 = vunpack.c.h.b16 %v314
    %v857 = vunpack.c.l.b16 %v315
    %v858 = vunpack.c.h.b16 %v315
    %v859 = vunpack.c.l.b16 %v316
    %v860 = vunpack.c.h.b16 %v316
    %v861 = vunpack.c.l.b16 %v317
    %v862 = vunpack.c.h.b16 %v317
    %v863 = vunpack.c.l.b16 %v318
    %v864 = vunpack.c.h.b16 %v318
    %v865 = vunpack.c.l.b16 %v319
    %v866 = vunpack.c.h.b16 %v319
    %v867 = vunpack.c.l.b16 %v320
    %v868 = vunpack.c.h.b16 %v320
    %v869 = vunpack.c.l.b16 %v321
    %v870 = vunpack.c.h.b16 %v321
    %v871 = vunpack.c.l.b16 %v322
    %v872 = vunpack.c.h.b16 %v322
    %v873 = vunpack.c.l.b16 %v323
    %v874 = vunpack.c.h.b16 %v323
    %v875 = vunpack.c.l.b16 %v324
    %v876 = vunpack.c.h.b16 %v324
    %v877 = vunpack.c.l.b16 %v325
    %v878 = vunpack.c.h.b16 %v325
    %v879 = vunpack.c.l.b16 %v326
    %v880 = vunpack.c.h.b16 %v326
    %v881 = vunpack.c.l.b16 %v327
    %v882 = vunpack.c.h.b16 %v327
    %v883 = vunpack.c.l.b16 %v328
    %v884 = vunpack.c.h.b16 %v328
    %v885 = vunpack.c.l.b16 %v329
    %v886 = vunpack.c.h.b16 %v329
    %v887 = vunpack.c.l.b16 %v330
    %v888 = vunpack.c.h.b16 %v330
    %v889 = vunpack.c.l.b16 %v331
    %v890 = vunpack.c.h.b16 %v331
    %v891 = vunpack.c.l.b16 %v332
    %v892 = vunpack.c.h.b16 %v332
    %v893 = vunpack.c.l.b16 %v333
    %v894 = vunpack.c.h.b16 %v333
    %v895 = vunpack.c.l.b16 %v334
    %v896 = vunpack.c.h.b16 %v334
    %v897 = vunpack.c.l.b16 %v335
    %v898 = vunpack.c.h.b16 %v335
    %v899 = vunpack.c.l.b16 %v336
    %v900 = vunpack.c.h.b16 %v336
    %v901 = vunpack.c.l.b16 %v337
    %v902 = vunpack.c.h.b16 %v337
    %v903 = vunpack.c.l.b16 %v338
    %v904 = vunpack.c.h.b16 %v338
    %v905 = vunpack.c.l.b16 %v339
    %v906 = vunpack.c.h.b16 %v339
    %v907 = vunpack.c.l.b16 %v340
    %v908 = vunpack.c.h.b16 %v340
    %v909 = vunpack.c.l.b16 %v341
    %v910 = vunpack.c.h.b16 %v341
    %v911 = vunpack.c.l.b16 %v342
    %v912 = vunpack.c.h.b16 %v342
    %v913 = vunpack.c.l.b16 %v343
    %v914 = vunpack.c.h.b16 %v343
    %v915 = vunpack.c.l.b16 %v344
    %v916 = vunpack.c.h.b16 %v344
    %v917 = vunpack.c.l.b16 %v345
    %v918 = vunpack.c.h.b16 %v345
    %v919 = vunpack.c.l.b16 %v346
    %v920 = vunpack.c.h.b16 %v346
    %v921 = vunpack.c.l.b16 %v347
    %v922 = vunpack.c.h.b16 %v347
    %v923 = vunpack.c.l.b16 %v348
    %v924 = vunpack.c.h.b16 %v348
    %v925 = vunpack.c.l.b16 %v349
    %v926 = vunpack.c.h.b16 %v349
    %v927 = vunpack.c.l.b16 %v350
    %v928 = vunpack.c.h.b16 %v350
    %v929 = vunpack.c.l.b16 %v351
    %v930 = vunpack.c.h.b16 %v351
    %v931 = vunpack.c.l.b16 %v352
    %v932 = vunpack.c.h.b16 %v352
    %v933 = vunpack.c.l.b16 %v353
    %v934 = vunpack.c.h.b16 %v353
    %v935 = vunpack.c.l.b16 %v354
    %v936 = vunpack.c.h.b16 %v354
    %v937 = vunpack.c.l.b16 %v355
    %v938 = vunpack.c.h.b16 %v355
    %v939 = vunpack.c.l.b16 %v356
    %v940 = vunpack.c.h.b16 %v356
    %v941 = vunpack.c.l.b16 %v357
    %v942 = vunpack.c.h.b16 %v357
    %v943 = vunpack.c.l.b16 %v358
    %v944 = vunpack.c.h.b16 %v358
    %v945 = vunpack.c.l.b16 %v359
    %v946 = vunpack.c.h.b16 %v359
    %v947 = vunpack.c.l.b16 %v360
    %v948 = vunpack.c.h.b16 %v360
    %v949 = vunpack.c.l.b16 %v361
    %v950 = vunpack.c.h.b16 %v361
    %v951 = vunpack.c.l.b16 %v362
    %v952 = vunpack.c.h.b16 %v362
    %v953 = vunpack.c.l.b16 %v363
    %v954 = vunpack.c.h.b16 %v363
    %v955 = vunpack.c.l.b16 %v364
    %v956 = vunpack.c.h.b16 %v364
    %v957 = vunpack.c.l.b16 %v365
    %v958 = vunpack.c.h.b16 %v365
    %v959 = vunpack.c.l.b16 %v366
    %v960 = vunpack.c.h.b16 %v366
    %v961 = vunpack.c.l.b16 %v367
    %v962 = vunpack.c.h.b16 %v367
    %v963 = vunpack.c.l.b16 %v368
    %v964 = vunpack.c.h.b16 %v368
    %v965 = vunpack.c.l.b16 %v369
    %v966 = vunpack.c.h.b16 %v369
    %v967 = vunpack.c.l.b16 %v370
    %v968 = vunpack.c.h.b16 %v370
    %v969 = vunpack.c.l.b16 %v371
    %v970 = vunpack.c.h.b16 %v371
    %v971 = vunpack.c.l.b16 %v372
    %v972 = vunpack.c.h.b16 %v372
    %v973 = vunpack.c.l.b16 %v373
    %v974 = vunpack.c.h.b16 %v373
    %v975 = vunpack.c.l.b16 %v374
    %v976 = vunpack.c.h.b16 %v374
    %v977 = vunpack.c.l.b16 %v375
    %v978 = vunpack.c.h.b16 %v375
    %v979 = vunpack.c.l.b16 %v376
    %v980 = vunpack.c.h.b16 %v376
    %v981 = vunpack.c.l.b16 %v377
    %v982 = vunpack.c.h.b16 %v377
    %v983 = vunpack.c.l.b16 %v378
    %v984 = vunpack.c.h.b16 %v378
    %v985 = vunpack.c.l.b16 %v379
    %v986 = vunpack.c.h.b16 %v379
    %v987 = vunpack.c.l.b16 %v380
    %v988 = vunpack.c.h.b16 %v380
    %v989 = vunpack.c.l.b16 %v381
    %v990 = vunpack.c.h.b16 %v381
    %v991 = vunpack.c.l.b16 %v382
    %v992 = vunpack.c.h.b16 %v382
    %v993 = vpack.c.b16 %v605, %v601
    %v994 = vpack.c.b16 %v606, %v602
    %v995 = vpack.c.b16 %v607, %v603
    %v996 = vpack.c.b16 %v608, %v604
    %v997 = vpack.c.b16 %v613, %v609
    %v998 = vpack.c.b16 %v614, %v610
    %v999 = vpack.c.b16 %v615, %v611
    %v1000 = vpack.c.b16 %v616, %v612
    %v1001 = vpack.c.b16 %v621, %v617
    %v1002 = vpack.c.b16 %v622, %v618
    %v1003 = vpack.c.b16 %v623, %v619
    %v1004 = vpack.c.b16 %v624, %v620
    %v1005 = vpack.c.b16 %v629, %v625
    %v1006 = vpack.c.b16 %v630, %v626
    %v1007 = vpack.c.b16 %v631, %v627
    %v1008 = vpack.c.b16 %v632, %v628
    %v1009 = vpack.c.b16 %v637, %v633
    %v1010 = vpack.c.b16 %v638, %v634
    %v1011 = vpack.c.b16 %v639, %v635
    %v1012 = vpack.c.b16 %v640, %v636
    %v1013 = vpack.c.b16 %v645, %v641
    %v1014 = vpack.c.b16 %v646, %v642
    %v1015 = vpack.c.b16 %v647, %v643
    %v1016 = vpack.c.b16 %v648, %v644
    %v1017 = vpack.c.b16 %v653, %v649
    %v1018 = vpack.c.b16 %v654, %v650
    %v1019 = vpack.c.b16 %v655, %v651
    %v1020 = vpack.c.b16 %v656, %v652
    %v1021 = vpack.c.b16 %v661, %v657
    %v1022 = vpack.c.b16 %v662, %v658
    %v1023 = vpack.c.b16 %v663, %v659
    %v1024 = vpack.c.b16 %v664, %v660
    %v1025 = vpack.c.b16 %v669, %v665
    %v1026 = vpack.c.b16 %v670, %v666
    %v1027 = vpack.c.b16 %v671, %v667
    %v1028 = vpack.c.b16 %v672, %v668
    %v1029 = vpack.c.b16 %v677, %v673
    %v1030 = vpack.c.b16 %v678, %v674
    %v1031 = vpack.c.b16 %v679, %v675
    %v1032 = vpack.c.b16 %v680, %v676
    %v1033 = vpack.c.b16 %v685, %v681
    %v1034 = vpack.c.b16 %v686, %v682
    %v1035 = vpack.c.b16 %v687, %v683
    %v1036 = vpack.c.b16 %v688, %v684
    %v1037 = vpack.c.b16 %v693, %v689
    %v1038 = vpack.c.b16 %v694, %v690
    %v1039 = vpack.c.b16 %v695, %v691
    %v1040 = vpack.c.b16 %v696, %v692
    %v1041 = vpack.c.b16 %v701, %v697
    %v1042 = vpack.c.b16 %v702, %v698
    %v1043 = vpack.c.b16 %v703, %v699
    %v1044 = vpack.c.b16 %v704, %v700
    %v1045 = vpack.c.b16 %v709, %v705
    %v1046 = vpack.c.b16 %v710, %v706
    %v1047 = vpack.c.b16 %v711, %v707
    %v1048 = vpack.c.b16 %v712, %v708
    %v1049 = vpack.c.b16 %v717, %v713
    %v1050 = vpack.c.b16 %v718, %v714
    %v1051 = vpack.c.b16 %v719, %v715
    %v1052 = vpack.c.b16 %v720, %v716
    %v1053 = vpack.c.b16 %v725, %v721
    %v1054 = vpack.c.b16 %v726, %v722
    %v1055 = vpack.c.b16 %v727, %v723
    %v1056 = vpack.c.b16 %v728, %v724
    %v1057 = vpack.c.b16 %v733, %v729
    %v1058 = vpack.c.b16 %v734, %v730
    %v1059 = vpack.c.b16 %v735, %v731
    %v1060 = vpack.c.b16 %v736, %v732
    %v1061 = vpack.c.b16 %v741, %v737
    %v1062 = vpack.c.b16 %v742, %v738
    %v1063 = vpack.c.b16 %v743, %v739
    %v1064 = vpack.c.b16 %v744, %v740
    %v1065 = vpack.c.b16 %v749, %v745
    %v1066 = vpack.c.b16 %v750, %v746
    %v1067 = vpack.c.b16 %v751, %v747
    %v1068 = vpack.c.b16 %v752, %v748
    %v1069 = vpack.c.b16 %v757, %v753
    %v1070 = vpack.c.b16 %v758, %v754
    %v1071 = vpack.c.b16 %v759, %v755
    %v1072 = vpack.c.b16 %v760, %v756
    %v1073 = vpack.c.b16 %v765, %v761
    %v1074 = vpack.c.b16 %v766, %v762
    %v1075 = vpack.c.b16 %v767, %v763
    %v1076 = vpack.c.b16 %v768, %v764
    %v1077 = vpack.c.b16 %v773, %v769
    %v1078 = vpack.c.b16 %v774, %v770
    %v1079 = vpack.c.b16 %v775, %v771
    %v1080 = vpack.c.b16 %v776, %v772
    %v1081 = vpack.c.b16 %v781, %v777
    %v1082 = vpack.c.b16 %v782, %v778
    %v1083 = vpack.c.b16 %v783, %v779
    %v1084 = vpack.c.b16 %v784, %v780
    %v1085 = vpack.c.b16 %v789, %v785
    %v1086 = vpack.c.b16 %v790, %v786
    %v1087 = vpack.c.b16 %v791, %v787
    %v1088 = vpack.c.b16 %v792, %v788
    %v1089 = vpack.c.b16 %v797, %v793
    %v1090 = vpack.c.b16 %v798, %v794
    %v1091 = vpack.c.b16 %v799, %v795
    %v1092 = vpack.c.b16 %v800, %v796
    %v1093 = vpack.c.b16 %v805, %v801
    %v1094 = vpack.c.b16 %v806, %v802
    %v1095 = vpack.c.b16 %v807, %v803
    %v1096 = vpack.c.b16 %v808, %v804
    %v1097 = vpack.c.b16 %v813, %v809
    %v1098 = vpack.c.b16 %v814, %v810
    %v1099 = vpack.c.b16 %v815, %v811
    %v1100 = vpack.c.b16 %v816, %v812
    %v1101 = vpack.c.b16 %v821, %v817
    %v1102 = vpack.c.b16 %v822, %v818
    %v1103 = vpack.c.b16 %v823, %v819
    %v1104 = vpack.c.b16 %v824, %v820
    %v1105 = vpack.c.b16 %v829, %v825
    %v1106 = vpack.c.b16 %v830, %v826
    %v1107 = vpack.c.b16 %v831, %v827
    %v1108 = vpack.c.b16 %v832, %v828
    %v1109 = vpack.c.b16 %v837, %v833
    %v1110 = vpack.c.b16 %v838, %v834
    %v1111 = vpack.c.b16 %v839, %v835
    %v1112 = vpack.c.b16 %v840, %v836
    %v1113 = vpack.c.b16 %v845, %v841
    %v1114 = vpack.c.b16 %v846, %v842
    %v1115 = vpack.c.b16 %v847, %v843
    %v1116 = vpack.c.b16 %v848, %v844
    %v1117 = vpack.c.b16 %v853, %v849
    %v1118 = vpack.c.b16 %v854, %v850
    %v1119 = vpack.c.b16 %v855, %v851
    %v1120 = vpack.c.b16 %v856, %v852
    %v1121 = vpack.c.b16 %v861, %v857
    %v1122 = vpack.c.b16 %v862, %v858
    %v1123 = vpack.c.b16 %v863, %v859
    %v1124 = vpack.c.b16 %v864, %v860
    %v1125 = vpack.c.b16 %v869, %v865
    %v1126 = vpack.c.b16 %v870, %v866
    %v1127 = vpack.c.b16 %v871, %v867
    %v1128 = vpack.c.b16 %v872, %v868
    %v1129 = vpack.c.b16 %v877, %v873
    %v1130 = vpack.c.b16 %v878, %v874
    %v1131 = vpack.c.b16 %v879, %v875
    %v1132 = vpack.c.b16 %v880, %v876
    %v1133 = vpack.c.b16 %v885, %v881
    %v1134 = vpack.c.b16 %v886, %v882
    %v1135 = vpack.c.b16 %v887, %v883
    %v1136 = vpack.c.b16 %v888, %v884
    %v1137 = vpack.c.b16 %v893, %v889
    %v1138 = vpack.c.b16 %v894, %v890
    %v1139 = vpack.c.b16 %v895, %v891
    %v1140 = vpack.c.b16 %v896, %v892
    %v1141 = vpack.c.b16 %v901, %v897
    %v1142 = vpack.c.b16 %v902, %v898
    %v1143 = vpack.c.b16 %v903, %v899
    %v1144 = vpack.c.b16 %v904, %v900
    %v1145 = vpack.c.b16 %v909, %v905
    %v1146 = vpack.c.b16 %v910, %v906
    %v1147 = vpack.c.b16 %v911, %v907
    %v1148 = vpack.c.b16 %v912, %v908
    %v1149 = vpack.c.b16 %v917, %v913
    %v1150 = vpack.c.b16 %v918, %v914
    %v1151 = vpack.c.b16 %v919, %v915
    %v1152 = vpack.c.b16 %v920, %v916
    %v1153 = vpack.c.b16 %v925, %v921
    %v1154 = vpack.c.b16 %v926, %v922
    %v1155 = vpack.c.b16 %v927, %v923
    %v1156 = vpack.c.b16 %v928, %v924
    %v1157 = vpack.c.b16 %v933, %v929
    %v1158 = vpack.c.b16 %v934, %v930
    %v1159 = vpack.c.b16 %v935, %v931
    %v1160 = vpack.c.b16 %v936, %v932
    %v1161 = vpack.c.b16 %v941, %v937
    %v1162 = vpack.c.b16 %v942, %v938
    %v1163 = vpack.c.b16 %v943, %v939
    %v1164 = vpack.c.b16 %v944, %v940
    %v1165 = vpack.c.b16 %v949, %v945
    %v1166 = vpack.c.b16 %v950, %v946
    %v1167 = vpack.c.b16 %v951, %v947
    %v1168 = vpack.c.b16 %v952, %v948
    %v1169 = vpack.c.b16 %v957, %v953
    %v1170 = vpack.c.b16 %v958, %v954
    %v1171 = vpack.c.b16 %v959, %v955
    %v1172 = vpack.c.b16 %v960, %v956
    %v1173 = vpack.c.b16 %v965, %v961
    %v1174 = vpack.c.b16 %v966, %v962
    %v1175 = vpack.c.b16 %v967, %v963
    %v1176 = vpack.c.b16 %v968, %v964
    %v1177 = vpack.c.b16 %v973, %v969
    %v1178 = vpack.c.b16 %v974, %v970
    %v1179 = vpack.c.b16 %v975, %v971
    %v1180 = vpack.c.b16 %v976, %v972
    %v1181 = vpack.c.b16 %v981, %v977
    %v1182 = vpack.c.b16 %v982, %v978
    %v1183 = vpack.c.b16 %v983, %v979
    %v1184 = vpack.c.b16 %v984, %v980
    %v1185 = vpack.c.b16 %v989, %v985
    %v1186 = vpack.c.b16 %v990, %v986
    %v1187 = vpack.c.b16 %v991, %v987
    %v1188 = vpack.c.b16 %v992, %v988
    %vm1385 = vcmask 130048
    %v1387 = vsel %vm1385, %v186, 0
    %1389 = vmatprep.subr.bf16.mxu0 %v1022
    %1390 = vmatpush1.bf16.msra.mxu0 %v1021
    %1391 = vmatprep.subr.bf16.mxu0 %v1018
    %1392 = vmatpush1.bf16.msra.mxu0 %v1017
    %1393 = vmatprep.subr.bf16.mxu0 %v1014
    %1394 = vmatpush1.bf16.msra.mxu0 %v1013
    %1395 = vmatprep.subr.bf16.mxu0 %v1010
    %1396 = vmatpush1.bf16.msra.mxu0 %v1009
    %1397 = vmatprep.subr.bf16.mxu0 %v1006
    %1398 = vmatpush1.bf16.msra.mxu0 %v1005
    %1399 = vmatprep.subr.bf16.mxu0 %v1002
    %1400 = vmatpush1.bf16.msra.mxu0 %v1001
    %1401 = vmatprep.subr.bf16.mxu0 %v998
    %1402 = vmatpush1.bf16.msra.mxu0 %v997
    %1403 = vmatprep.subr.bf16.mxu0 %v994
    %1404 = vmatpush1.bf16.msra.mxu0 %v993
    %1405 = vmatprep.subr.bf16.mxu0 %v1054
    %1406 = vmatpush2.bf16.msra.mxu0 %v1053
    %1407 = vmatprep.subr.bf16.mxu0 %v1050
    %1408 = vmatpush2.bf16.msra.mxu0 %v1049
    %1409 = vmatprep.subr.bf16.mxu0 %v1046
    %1410 = vmatpush2.bf16.msra.mxu0 %v1045
    %1411 = vmatprep.subr.bf16.mxu0 %v1042
    %1412 = vmatpush2.bf16.msra.mxu0 %v1041
    %1413 = vmatprep.subr.bf16.mxu0 %v1038
    %1414 = vmatpush2.bf16.msra.mxu0 %v1037
    %1415 = vmatprep.subr.bf16.mxu0 %v1034
    %1416 = vmatpush2.bf16.msra.mxu0 %v1033
    %1417 = vmatprep.subr.bf16.mxu0 %v1030
    %1418 = vmatpush2.bf16.msra.mxu0 %v1029
    %1419 = vmatprep.subr.bf16.mxu0 %v1026
    %1420 = vmatpush2.bf16.msra.mxu0 %v1025
    %1421 = vmatprep.mubr.bf16.mxu0 %v181
    %1422 = vmatmul.mubr.bf16.gmra.mxu0 %v180
    %v1423 = vpop.f32.mrf.mxu0
    %v1424 = vadd.f32 %v388, %v1423
    %v1425 = vpop.f32.mrf.mxu0
    %v1426 = vadd.f32 %v392, %v1425
    %v1427 = vpop.f32.mrf.mxu0
    %v1428 = vpop.f32.mrf.mxu0
    %1429 = vdwg.mxu0
    %1430 = vmatprep.subr.bf16.mxu0 %v1086
    %1431 = vmatpush1.bf16.msra.mxu0 %v1085
    %1432 = vmatprep.subr.bf16.mxu0 %v1082
    %1433 = vmatpush1.bf16.msra.mxu0 %v1081
    %1434 = vmatprep.subr.bf16.mxu0 %v1078
    %1435 = vmatpush1.bf16.msra.mxu0 %v1077
    %1436 = vmatprep.subr.bf16.mxu0 %v1074
    %1437 = vmatpush1.bf16.msra.mxu0 %v1073
    %1438 = vmatprep.subr.bf16.mxu0 %v1070
    %1439 = vmatpush1.bf16.msra.mxu0 %v1069
    %1440 = vmatprep.subr.bf16.mxu0 %v1066
    %1441 = vmatpush1.bf16.msra.mxu0 %v1065
    %1442 = vmatprep.subr.bf16.mxu0 %v1062
    %1443 = vmatpush1.bf16.msra.mxu0 %v1061
    %1444 = vmatprep.subr.bf16.mxu0 %v1058
    %1445 = vmatpush1.bf16.msra.mxu0 %v1057
    %1446 = vmatprep.subr.bf16.mxu0 %v1118
    %1447 = vmatpush2.bf16.msra.mxu0 %v1117
    %1448 = vmatprep.subr.bf16.mxu0 %v1114
    %1449 = vmatpush2.bf16.msra.mxu0 %v1113
    %1450 = vmatprep.subr.bf16.mxu0 %v1110
    %1451 = vmatpush2.bf16.msra.mxu0 %v1109
    %1452 = vmatprep.subr.bf16.mxu0 %v1106
    %1453 = vmatpush2.bf16.msra.mxu0 %v1105
    %1454 = vmatprep.subr.bf16.mxu0 %v1102
    %1455 = vmatpush2.bf16.msra.mxu0 %v1101
    %1456 = vmatprep.subr.bf16.mxu0 %v1098
    %1457 = vmatpush2.bf16.msra.mxu0 %v1097
    %1458 = vmatprep.subr.bf16.mxu0 %v1094
    %1459 = vmatpush2.bf16.msra.mxu0 %v1093
    %1460 = vmatprep.subr.bf16.mxu0 %v1090
    %1461 = vmatpush2.bf16.msra.mxu0 %v1089
    %1462 = vmatprep.mubr.bf16.mxu0 %v183
    %1463 = vmatmul.mubr.bf16.gmra.mxu0 %v182
    %v1464 = vpop.f32.mrf.mxu0
    %v1465 = vadd.f32 %v1424, %v1464
    %v1466 = vpop.f32.mrf.mxu0
    %v1467 = vadd.f32 %v1426, %v1466
    %v1468 = vpop.f32.mrf.mxu0
    %v1469 = vpop.f32.mrf.mxu0
    %1470 = vdwg.mxu0
    %1471 = vmatprep.subr.bf16.mxu0 %v1150
    %1472 = vmatpush1.bf16.msra.mxu0 %v1149
    %1473 = vmatprep.subr.bf16.mxu0 %v1146
    %1474 = vmatpush1.bf16.msra.mxu0 %v1145
    %1475 = vmatprep.subr.bf16.mxu0 %v1142
    %1476 = vmatpush1.bf16.msra.mxu0 %v1141
    %1477 = vmatprep.subr.bf16.mxu0 %v1138
    %1478 = vmatpush1.bf16.msra.mxu0 %v1137
    %1479 = vmatprep.subr.bf16.mxu0 %v1134
    %1480 = vmatpush1.bf16.msra.mxu0 %v1133
    %1481 = vmatprep.subr.bf16.mxu0 %v1130
    %1482 = vmatpush1.bf16.msra.mxu0 %v1129
    %1483 = vmatprep.subr.bf16.mxu0 %v1126
    %1484 = vmatpush1.bf16.msra.mxu0 %v1125
    %1485 = vmatprep.subr.bf16.mxu0 %v1122
    %1486 = vmatpush1.bf16.msra.mxu0 %v1121
    %1487 = vmatprep.subr.bf16.mxu0 %v1182
    %1488 = vmatpush2.bf16.msra.mxu0 %v1181
    %1489 = vmatprep.subr.bf16.mxu0 %v1178
    %1490 = vmatpush2.bf16.msra.mxu0 %v1177
    %1491 = vmatprep.subr.bf16.mxu0 %v1174
    %1492 = vmatpush2.bf16.msra.mxu0 %v1173
    %1493 = vmatprep.subr.bf16.mxu0 %v1170
    %1494 = vmatpush2.bf16.msra.mxu0 %v1169
    %1495 = vmatprep.subr.bf16.mxu0 %v1166
    %1496 = vmatpush2.bf16.msra.mxu0 %v1165
    %1497 = vmatprep.subr.bf16.mxu0 %v1162
    %1498 = vmatpush2.bf16.msra.mxu0 %v1161
    %1499 = vmatprep.subr.bf16.mxu0 %v1158
    %1500 = vmatpush2.bf16.msra.mxu0 %v1157
    %1501 = vmatprep.subr.bf16.mxu0 %v1154
    %1502 = vmatpush2.bf16.msra.mxu0 %v1153
    %1503 = vmatprep.mubr.bf16.mxu0 %v185
    %1504 = vmatmul.mubr.bf16.gmra.mxu0 %v184
    %v1505 = vpop.f32.mrf.mxu0
    %v1506 = vadd.f32 %v1465, %v1505
    %v1507 = vpop.f32.mrf.mxu0
    %v1508 = vadd.f32 %v1467, %v1507
    %v1509 = vpop.f32.mrf.mxu0
    %v1510 = vpop.f32.mrf.mxu0
    %1511 = vdwg.mxu0
    %1512 = vmatprep.subr.bf16.mxu0 0
    %1513 = vmatpush1.bf16.msra.mxu0 0
    %1514 = vmatprep.subr.bf16.mxu0 0
    %1515 = vmatpush1.bf16.msra.mxu0 0
    %1516 = vmatprep.subr.bf16.mxu0 0
    %1517 = vmatpush1.bf16.msra.mxu0 0
    %1518 = vmatprep.subr.bf16.mxu0 0
    %1519 = vmatpush1.bf16.msra.mxu0 0
    %1520 = vmatprep.subr.bf16.mxu0 0
    %1521 = vmatpush1.bf16.msra.mxu0 0
    %1522 = vmatprep.subr.bf16.mxu0 0
    %1523 = vmatpush1.bf16.msra.mxu0 0
    %1524 = vmatprep.subr.bf16.mxu0 0
    %1525 = vmatpush1.bf16.msra.mxu0 0
    %1526 = vmatprep.subr.bf16.mxu0 %v1186
    %1527 = vmatpush1.bf16.msra.mxu0 %v1185
    %1528 = vmatprep.subr.bf16.mxu0 0
    %1529 = vmatpush2.bf16.msra.mxu0 0
    %1530 = vmatprep.subr.bf16.mxu0 0
    %1531 = vmatpush2.bf16.msra.mxu0 0
    %1532 = vmatprep.subr.bf16.mxu0 0
    %1533 = vmatpush2.bf16.msra.mxu0 0
    %1534 = vmatprep.subr.bf16.mxu0 0
    %1535 = vmatpush2.bf16.msra.mxu0 0
    %1536 = vmatprep.subr.bf16.mxu0 0
    %1537 = vmatpush2.bf16.msra.mxu0 0
    %1538 = vmatprep.subr.bf16.mxu0 0
    %1539 = vmatpush2.bf16.msra.mxu0 0
    %1540 = vmatprep.subr.bf16.mxu0 0
    %1541 = vmatpush2.bf16.msra.mxu0 0
    %1542 = vmatprep.subr.bf16.mxu0 0
    %1543 = vmatpush2.bf16.msra.mxu0 0
    %1544 = vmatprep.mubr.bf16.mxu0 0
    %1545 = vmatmul.mubr.bf16.gmra.mxu0 %v1387
    %v1546 = vpop.f32.mrf.mxu0
    %v1547 = vadd.f32 %v1506, %v1546
    %v1548 = vpop.f32.mrf.mxu0
    %v1549 = vadd.f32 %v1508, %v1548
    %v1550 = vpop.f32.mrf.mxu0
    %v1551 = vpop.f32.mrf.mxu0
    %1552 = vdwg.mxu0
    %1553 = vmatprep.subr.bf16.mxu0 %v1024
    %1554 = vmatpush1.bf16.msra.mxu0 %v1023
    %1555 = vmatprep.subr.bf16.mxu0 %v1020
    %1556 = vmatpush1.bf16.msra.mxu0 %v1019
    %1557 = vmatprep.subr.bf16.mxu0 %v1016
    %1558 = vmatpush1.bf16.msra.mxu0 %v1015
    %1559 = vmatprep.subr.bf16.mxu0 %v1012
    %1560 = vmatpush1.bf16.msra.mxu0 %v1011
    %1561 = vmatprep.subr.bf16.mxu0 %v1008
    %1562 = vmatpush1.bf16.msra.mxu0 %v1007
    %1563 = vmatprep.subr.bf16.mxu0 %v1004
    %1564 = vmatpush1.bf16.msra.mxu0 %v1003
    %1565 = vmatprep.subr.bf16.mxu0 %v1000
    %1566 = vmatpush1.bf16.msra.mxu0 %v999
    %1567 = vmatprep.subr.bf16.mxu0 %v996
    %1568 = vmatpush1.bf16.msra.mxu0 %v995
    %1569 = vmatprep.subr.bf16.mxu0 %v1056
    %1570 = vmatpush2.bf16.msra.mxu0 %v1055
    %1571 = vmatprep.subr.bf16.mxu0 %v1052
    %1572 = vmatpush2.bf16.msra.mxu0 %v1051
    %1573 = vmatprep.subr.bf16.mxu0 %v1048
    %1574 = vmatpush2.bf16.msra.mxu0 %v1047
    %1575 = vmatprep.subr.bf16.mxu0 %v1044
    %1576 = vmatpush2.bf16.msra.mxu0 %v1043
    %1577 = vmatprep.subr.bf16.mxu0 %v1040
    %1578 = vmatpush2.bf16.msra.mxu0 %v1039
    %1579 = vmatprep.subr.bf16.mxu0 %v1036
    %1580 = vmatpush2.bf16.msra.mxu0 %v1035
    %1581 = vmatprep.subr.bf16.mxu0 %v1032
    %1582 = vmatpush2.bf16.msra.mxu0 %v1031
    %1583 = vmatprep.subr.bf16.mxu0 %v1028
    %1584 = vmatpush2.bf16.msra.mxu0 %v1027
    %1585 = vmatprep.mubr.bf16.mxu0 %v181
    %1586 = vmatmul.mubr.bf16.gmra.mxu0 %v180
    %v1587 = vpop.f32.mrf.mxu0
    %v1588 = vadd.f32 %v396, %v1587
    %v1589 = vpop.f32.mrf.mxu0
    %v1590 = vadd.f32 %v400, %v1589
    %v1591 = vpop.f32.mrf.mxu0
    %v1592 = vpop.f32.mrf.mxu0
    %1593 = vdwg.mxu0
    %1594 = vmatprep.subr.bf16.mxu0 %v1088
    %1595 = vmatpush1.bf16.msra.mxu0 %v1087
    %1596 = vmatprep.subr.bf16.mxu0 %v1084
    %1597 = vmatpush1.bf16.msra.mxu0 %v1083
    %1598 = vmatprep.subr.bf16.mxu0 %v1080
    %1599 = vmatpush1.bf16.msra.mxu0 %v1079
    %1600 = vmatprep.subr.bf16.mxu0 %v1076
    %1601 = vmatpush1.bf16.msra.mxu0 %v1075
    %1602 = vmatprep.subr.bf16.mxu0 %v1072
    %1603 = vmatpush1.bf16.msra.mxu0 %v1071
    %1604 = vmatprep.subr.bf16.mxu0 %v1068
    %1605 = vmatpush1.bf16.msra.mxu0 %v1067
    %1606 = vmatprep.subr.bf16.mxu0 %v1064
    %1607 = vmatpush1.bf16.msra.mxu0 %v1063
    %1608 = vmatprep.subr.bf16.mxu0 %v1060
    %1609 = vmatpush1.bf16.msra.mxu0 %v1059
    %1610 = vmatprep.subr.bf16.mxu0 %v1120
    %1611 = vmatpush2.bf16.msra.mxu0 %v1119
    %1612 = vmatprep.subr.bf16.mxu0 %v1116
    %1613 = vmatpush2.bf16.msra.mxu0 %v1115
    %1614 = vmatprep.subr.bf16.mxu0 %v1112
    %1615 = vmatpush2.bf16.msra.mxu0 %v1111
    %1616 = vmatprep.subr.bf16.mxu0 %v1108
    %1617 = vmatpush2.bf16.msra.mxu0 %v1107
    %1618 = vmatprep.subr.bf16.mxu0 %v1104
    %1619 = vmatpush2.bf16.msra.mxu0 %v1103
    %1620 = vmatprep.subr.bf16.mxu0 %v1100
    %1621 = vmatpush2.bf16.msra.mxu0 %v1099
    %1622 = vmatprep.subr.bf16.mxu0 %v1096
    %1623 = vmatpush2.bf16.msra.mxu0 %v1095
    %1624 = vmatprep.subr.bf16.mxu0 %v1092
    %1625 = vmatpush2.bf16.msra.mxu0 %v1091
    %1626 = vmatprep.mubr.bf16.mxu0 %v183
    %1627 = vmatmul.mubr.bf16.gmra.mxu0 %v182
    %v1628 = vpop.f32.mrf.mxu0
    %v1629 = vadd.f32 %v1588, %v1628
    %v1630 = vpop.f32.mrf.mxu0
    %v1631 = vadd.f32 %v1590, %v1630
    %v1632 = vpop.f32.mrf.mxu0
    %v1633 = vpop.f32.mrf.mxu0
    %1634 = vdwg.mxu0
    %1635 = vmatprep.subr.bf16.mxu0 %v1152
    %1636 = vmatpush1.bf16.msra.mxu0 %v1151
    %1637 = vmatprep.subr.bf16.mxu0 %v1148
    %1638 = vmatpush1.bf16.msra.mxu0 %v1147
    %1639 = vmatprep.subr.bf16.mxu0 %v1144
    %1640 = vmatpush1.bf16.msra.mxu0 %v1143
    %1641 = vmatprep.subr.bf16.mxu0 %v1140
    %1642 = vmatpush1.bf16.msra.mxu0 %v1139
    %1643 = vmatprep.subr.bf16.mxu0 %v1136
    %1644 = vmatpush1.bf16.msra.mxu0 %v1135
    %1645 = vmatprep.subr.bf16.mxu0 %v1132
    %1646 = vmatpush1.bf16.msra.mxu0 %v1131
    %1647 = vmatprep.subr.bf16.mxu0 %v1128
    %1648 = vmatpush1.bf16.msra.mxu0 %v1127
    %1649 = vmatprep.subr.bf16.mxu0 %v1124
    %1650 = vmatpush1.bf16.msra.mxu0 %v1123
    %1651 = vmatprep.subr.bf16.mxu0 %v1184
    %1652 = vmatpush2.bf16.msra.mxu0 %v1183
    %1653 = vmatprep.subr.bf16.mxu0 %v1180
    %1654 = vmatpush2.bf16.msra.mxu0 %v1179
    %1655 = vmatprep.subr.bf16.mxu0 %v1176
    %1656 = vmatpush2.bf16.msra.mxu0 %v1175
    %1657 = vmatprep.subr.bf16.mxu0 %v1172
    %1658 = vmatpush2.bf16.msra.mxu0 %v1171
    %1659 = vmatprep.subr.bf16.mxu0 %v1168
    %1660 = vmatpush2.bf16.msra.mxu0 %v1167
    %1661 = vmatprep.subr.bf16.mxu0 %v1164
    %1662 = vmatpush2.bf16.msra.mxu0 %v1163
    %1663 = vmatprep.subr.bf16.mxu0 %v1160
    %1664 = vmatpush2.bf16.msra.mxu0 %v1159
    %1665 = vmatprep.subr.bf16.mxu0 %v1156
    %1666 = vmatpush2.bf16.msra.mxu0 %v1155
    %1667 = vmatprep.mubr.bf16.mxu0 %v185
    %1668 = vmatmul.mubr.bf16.gmra.mxu0 %v184
    %v1669 = vpop.f32.mrf.mxu0
    %v1670 = vadd.f32 %v1629, %v1669
    %v1671 = vpop.f32.mrf.mxu0
    %v1672 = vadd.f32 %v1631, %v1671
    %v1673 = vpop.f32.mrf.mxu0
    %v1674 = vpop.f32.mrf.mxu0
    %1675 = vdwg.mxu0
    %1676 = vmatprep.subr.bf16.mxu0 0
    %1677 = vmatpush1.bf16.msra.mxu0 0
    %1678 = vmatprep.subr.bf16.mxu0 0
    %1679 = vmatpush1.bf16.msra.mxu0 0
    %1680 = vmatprep.subr.bf16.mxu0 0
    %1681 = vmatpush1.bf16.msra.mxu0 0
    %1682 = vmatprep.subr.bf16.mxu0 0
    %1683 = vmatpush1.bf16.msra.mxu0 0
    %1684 = vmatprep.subr.bf16.mxu0 0
    %1685 = vmatpush1.bf16.msra.mxu0 0
    %1686 = vmatprep.subr.bf16.mxu0 0
    %1687 = vmatpush1.bf16.msra.mxu0 0
    %1688 = vmatprep.subr.bf16.mxu0 0
    %1689 = vmatpush1.bf16.msra.mxu0 0
    %1690 = vmatprep.subr.bf16.mxu0 %v1188
    %1691 = vmatpush1.bf16.msra.mxu0 %v1187
    %1692 = vmatprep.subr.bf16.mxu0 0
    %1693 = vmatpush2.bf16.msra.mxu0 0
    %1694 = vmatprep.subr.bf16.mxu0 0
    %1695 = vmatpush2.bf16.msra.mxu0 0
    %1696 = vmatprep.subr.bf16.mxu0 0
    %1697 = vmatpush2.bf16.msra.mxu0 0
    %1698 = vmatprep.subr.bf16.mxu0 0
    %1699 = vmatpush2.bf16.msra.mxu0 0
    %1700 = vmatprep.subr.bf16.mxu0 0
    %1701 = vmatpush2.bf16.msra.mxu0 0
    %1702 = vmatprep.subr.bf16.mxu0 0
    %1703 = vmatpush2.bf16.msra.mxu0 0
    %1704 = vmatprep.subr.bf16.mxu0 0
    %1705 = vmatpush2.bf16.msra.mxu0 0
    %1706 = vmatprep.subr.bf16.mxu0 0
    %1707 = vmatpush2.bf16.msra.mxu0 0
    %1708 = vmatprep.mubr.bf16.mxu0 0
    %1709 = vmatmul.mubr.bf16.gmra.mxu0 %v1387
    %v1710 = vpop.f32.mrf.mxu0
    %v1711 = vadd.f32 %v1670, %v1710
    %v1712 = vpop.f32.mrf.mxu0
    %v1713 = vadd.f32 %v1672, %v1712
    %v1714 = vpop.f32.mrf.mxu0
    %v1715 = vpop.f32.mrf.mxu0
    %1716 = vdwg.mxu0
    %v1717 = vmax.f32 %v1547, 0.0
    %v1718 = vmax.f32 %v1549, 0.0
    %v1719 = vmax.f32 %v1711, 0.0
    %v1720 = vmax.f32 %v1713, 0.0
    %v1721 = vpack.c.bf16 %v1717, %v1717
    %v1722 = vpack.c.bf16 %v1718, %v1718
    %v1723 = vpack.c.bf16 %v1719, %v1719
    %v1724 = vpack.c.bf16 %v1720, %v1720
    %v1725 = vld [vmem:[#allocation8] sm:$0xff]
    %v1726 = vld [vmem:[#allocation8 + $0x8] sm:$0xff]
    %v1727 = vld [vmem:[#allocation8 + $0x10] sm:$0xff]
    %v1728 = vld [vmem:[#allocation8 + $0x18] sm:$0xff]
    %v1729 = vld [vmem:[#allocation8 + $0x20] sm:$0xff]
    %v1730 = vld [vmem:[#allocation8 + $0x28] sm:$0xff]
    %v1731 = vld [vmem:[#allocation8 + $0x30] sm:$0xff]
    %v1732 = vld [vmem:[#allocation8 + $0x38] sm:$0xff]
    %v1733 = vld [vmem:[#allocation8 + $0x40] sm:$0xff]
    %v1734 = vld [vmem:[#allocation8 + $0x48] sm:$0xff]
    %v1735 = vld [vmem:[#allocation8 + $0x50] sm:$0xff]
    %v1736 = vld [vmem:[#allocation8 + $0x58] sm:$0xff]
    %v1737 = vld [vmem:[#allocation8 + $0x60] sm:$0xff]
    %v1738 = vld [vmem:[#allocation8 + $0x68] sm:$0xff]
    %v1739 = vld [vmem:[#allocation8 + $0x70] sm:$0xff]
    %v1740 = vld [vmem:[#allocation8 + $0x78] sm:$0xff]
    %v1741 = vld [vmem:[#allocation8 + $0x80] sm:$0xff]
    %v1742 = vld [vmem:[#allocation8 + $0x88] sm:$0xff]
    %v1743 = vld [vmem:[#allocation8 + $0x90] sm:$0xff]
    %v1744 = vld [vmem:[#allocation8 + $0x98] sm:$0xff]
    %v1745 = vld [vmem:[#allocation8 + $0xa0] sm:$0xff]
    %v1746 = vld [vmem:[#allocation8 + $0xa8] sm:$0xff]
    %v1747 = vld [vmem:[#allocation8 + $0xb0] sm:$0xff]
    %v1748 = vld [vmem:[#allocation8 + $0xb8] sm:$0xff]
    %v1749 = vld [vmem:[#allocation8 + $0xc0] sm:$0xff]
    %v1750 = vld [vmem:[#allocation8 + $0xc8] sm:$0xff]
    %v1751 = vld [vmem:[#allocation8 + $0xd0] sm:$0xff]
    %v1752 = vld [vmem:[#allocation8 + $0xd8] sm:$0xff]
    %v1753 = vld [vmem:[#allocation8 + $0xe0] sm:$0xff]
    %v1754 = vld [vmem:[#allocation8 + $0xe8] sm:$0xff]
    %v1755 = vld [vmem:[#allocation8 + $0xf0] sm:$0xff]
    %v1756 = vld [vmem:[#allocation8 + $0xf8] sm:$0xff]
    %v1757 = vld [vmem:[#allocation8 + $0x100] sm:$0xff]
    %v1758 = vld [vmem:[#allocation8 + $0x108] sm:$0xff]
    %v1759 = vld [vmem:[#allocation8 + $0x110] sm:$0xff]
    %v1760 = vld [vmem:[#allocation8 + $0x118] sm:$0xff]
    %v1761 = vld [vmem:[#allocation8 + $0x120] sm:$0xff]
    %v1762 = vld [vmem:[#allocation8 + $0x128] sm:$0xff]
    %v1763 = vld [vmem:[#allocation8 + $0x130] sm:$0xff]
    %v1764 = vld [vmem:[#allocation8 + $0x138] sm:$0xff]
    %v1765 = vld [vmem:[#allocation8 + $0x140] sm:$0xff]
    %v1766 = vld [vmem:[#allocation8 + $0x148] sm:$0xff]
    %v1767 = vld [vmem:[#allocation8 + $0x150] sm:$0xff]
    %v1768 = vld [vmem:[#allocation8 + $0x158] sm:$0xff]
    %v1769 = vld [vmem:[#allocation8 + $0x160] sm:$0xff]
    %v1770 = vld [vmem:[#allocation8 + $0x168] sm:$0xff]
    %v1771 = vld [vmem:[#allocation8 + $0x170] sm:$0xff]
    %v1772 = vld [vmem:[#allocation8 + $0x178] sm:$0xff]
    %v1773 = vld [vmem:[#allocation8 + $0x180] sm:$0xff]
    %v1774 = vld [vmem:[#allocation8 + $0x188] sm:$0xff]
    %v1775 = vld [vmem:[#allocation8 + $0x190] sm:$0xff]
    %v1776 = vld [vmem:[#allocation8 + $0x198] sm:$0xff]
    %v1777 = vld [vmem:[#allocation8 + $0x1a0] sm:$0xff]
    %v1778 = vld [vmem:[#allocation8 + $0x1a8] sm:$0xff]
    %v1779 = vld [vmem:[#allocation8 + $0x1b0] sm:$0xff]
    %v1780 = vld [vmem:[#allocation8 + $0x1b8] sm:$0xff]
    %v1781 = vld [vmem:[#allocation8 + $0x1c0] sm:$0xff]
    %v1782 = vld [vmem:[#allocation8 + $0x1c8] sm:$0xff]
    %v1783 = vld [vmem:[#allocation8 + $0x1d0] sm:$0xff]
    %v1784 = vld [vmem:[#allocation8 + $0x1d8] sm:$0xff]
    %v1785 = vld [vmem:[#allocation8 + $0x1e0] sm:$0xff]
    %v1786 = vld [vmem:[#allocation8 + $0x1e8] sm:$0xff]
    %v1787 = vld [vmem:[#allocation8 + $0x1f0] sm:$0xff]
    %v1788 = vld [vmem:[#allocation8 + $0x1f8] sm:$0xff]
    %v1789 = vld [vmem:[%s5] sm:$0x3]
    %v1791 = vlaneseq
    %v1792 = vshrl.u32 %v1791, 7
    %v1793 = vsub.s32 0, %v1792
    %v1794 = vrot.slane %v1789, %v1793
    %v1795 = vlaneseq
    %v1796 = vshrl.u32 %v1795, 7
    %v1797 = vsub.s32 1, %v1796
    %v1798 = vrot.slane %v1789, %v1797
    %v1865 = vunpack.c.l.b16 %v1725
    %v1866 = vunpack.c.h.b16 %v1725
    %v1867 = vunpack.c.l.b16 %v1726
    %v1868 = vunpack.c.h.b16 %v1726
    %v1869 = vunpack.c.l.b16 %v1727
    %v1870 = vunpack.c.h.b16 %v1727
    %v1871 = vunpack.c.l.b16 %v1728
    %v1872 = vunpack.c.h.b16 %v1728
    %v1873 = vunpack.c.l.b16 %v1729
    %v1874 = vunpack.c.h.b16 %v1729
    %v1875 = vunpack.c.l.b16 %v1730
    %v1876 = vunpack.c.h.b16 %v1730
    %v1877 = vunpack.c.l.b16 %v1731
    %v1878 = vunpack.c.h.b16 %v1731
    %v1879 = vunpack.c.l.b16 %v1732
    %v1880 = vunpack.c.h.b16 %v1732
    %v1881 = vunpack.c.l.b16 %v1733
    %v1882 = vunpack.c.h.b16 %v1733
    %v1883 = vunpack.c.l.b16 %v1734
    %v1884 = vunpack.c.h.b16 %v1734
    %v1885 = vunpack.c.l.b16 %v1735
    %v1886 = vunpack.c.h.b16 %v1735
    %v1887 = vunpack.c.l.b16 %v1736
    %v1888 = vunpack.c.h.b16 %v1736
    %v1889 = vunpack.c.l.b16 %v1737
    %v1890 = vunpack.c.h.b16 %v1737
    %v1891 = vunpack.c.l.b16 %v1738
    %v1892 = vunpack.c.h.b16 %v1738
    %v1893 = vunpack.c.l.b16 %v1739
    %v1894 = vunpack.c.h.b16 %v1739
    %v1895 = vunpack.c.l.b16 %v1740
    %v1896 = vunpack.c.h.b16 %v1740
    %v1897 = vunpack.c.l.b16 %v1741
    %v1898 = vunpack.c.h.b16 %v1741
    %v1899 = vunpack.c.l.b16 %v1742
    %v1900 = vunpack.c.h.b16 %v1742
    %v1901 = vunpack.c.l.b16 %v1743
    %v1902 = vunpack.c.h.b16 %v1743
    %v1903 = vunpack.c.l.b16 %v1744
    %v1904 = vunpack.c.h.b16 %v1744
    %v1905 = vunpack.c.l.b16 %v1745
    %v1906 = vunpack.c.h.b16 %v1745
    %v1907 = vunpack.c.l.b16 %v1746
    %v1908 = vunpack.c.h.b16 %v1746
    %v1909 = vunpack.c.l.b16 %v1747
    %v1910 = vunpack.c.h.b16 %v1747
    %v1911 = vunpack.c.l.b16 %v1748
    %v1912 = vunpack.c.h.b16 %v1748
    %v1913 = vunpack.c.l.b16 %v1749
    %v1914 = vunpack.c.h.b16 %v1749
    %v1915 = vunpack.c.l.b16 %v1750
    %v1916 = vunpack.c.h.b16 %v1750
    %v1917 = vunpack.c.l.b16 %v1751
    %v1918 = vunpack.c.h.b16 %v1751
    %v1919 = vunpack.c.l.b16 %v1752
    %v1920 = vunpack.c.h.b16 %v1752
    %v1921 = vunpack.c.l.b16 %v1753
    %v1922 = vunpack.c.h.b16 %v1753
    %v1923 = vunpack.c.l.b16 %v1754
    %v1924 = vunpack.c.h.b16 %v1754
    %v1925 = vunpack.c.l.b16 %v1755
    %v1926 = vunpack.c.h.b16 %v1755
    %v1927 = vunpack.c.l.b16 %v1756
    %v1928 = vunpack.c.h.b16 %v1756
    %v1929 = vunpack.c.l.b16 %v1757
    %v1930 = vunpack.c.h.b16 %v1757
    %v1931 = vunpack.c.l.b16 %v1758
    %v1932 = vunpack.c.h.b16 %v1758
    %v1933 = vunpack.c.l.b16 %v1759
    %v1934 = vunpack.c.h.b16 %v1759
    %v1935 = vunpack.c.l.b16 %v1760
    %v1936 = vunpack.c.h.b16 %v1760
    %v1937 = vunpack.c.l.b16 %v1761
    %v1938 = vunpack.c.h.b16 %v1761
    %v1939 = vunpack.c.l.b16 %v1762
    %v1940 = vunpack.c.h.b16 %v1762
    %v1941 = vunpack.c.l.b16 %v1763
    %v1942 = vunpack.c.h.b16 %v1763
    %v1943 = vunpack.c.l.b16 %v1764
    %v1944 = vunpack.c.h.b16 %v1764
    %v1945 = vunpack.c.l.b16 %v1765
    %v1946 = vunpack.c.h.b16 %v1765
    %v1947 = vunpack.c.l.b16 %v1766
    %v1948 = vunpack.c.h.b16 %v1766
    %v1949 = vunpack.c.l.b16 %v1767
    %v1950 = vunpack.c.h.b16 %v1767
    %v1951 = vunpack.c.l.b16 %v1768
    %v1952 = vunpack.c.h.b16 %v1768
    %v1953 = vunpack.c.l.b16 %v1769
    %v1954 = vunpack.c.h.b16 %v1769
    %v1955 = vunpack.c.l.b16 %v1770
    %v1956 = vunpack.c.h.b16 %v1770
    %v1957 = vunpack.c.l.b16 %v1771
    %v1958 = vunpack.c.h.b16 %v1771
    %v1959 = vunpack.c.l.b16 %v1772
    %v1960 = vunpack.c.h.b16 %v1772
    %v1961 = vunpack.c.l.b16 %v1773
    %v1962 = vunpack.c.h.b16 %v1773
    %v1963 = vunpack.c.l.b16 %v1774
    %v1964 = vunpack.c.h.b16 %v1774
    %v1965 = vunpack.c.l.b16 %v1775
    %v1966 = vunpack.c.h.b16 %v1775
    %v1967 = vunpack.c.l.b16 %v1776
    %v1968 = vunpack.c.h.b16 %v1776
    %v1969 = vunpack.c.l.b16 %v1777
    %v1970 = vunpack.c.h.b16 %v1777
    %v1971 = vunpack.c.l.b16 %v1778
    %v1972 = vunpack.c.h.b16 %v1778
    %v1973 = vunpack.c.l.b16 %v1779
    %v1974 = vunpack.c.h.b16 %v1779
    %v1975 = vunpack.c.l.b16 %v1780
    %v1976 = vunpack.c.h.b16 %v1780
    %v1977 = vunpack.c.l.b16 %v1781
    %v1978 = vunpack.c.h.b16 %v1781
    %v1979 = vunpack.c.l.b16 %v1782
    %v1980 = vunpack.c.h.b16 %v1782
    %v1981 = vunpack.c.l.b16 %v1783
    %v1982 = vunpack.c.h.b16 %v1783
    %v1983 = vunpack.c.l.b16 %v1784
    %v1984 = vunpack.c.h.b16 %v1784
    %v1985 = vunpack.c.l.b16 %v1785
    %v1986 = vunpack.c.h.b16 %v1785
    %v1987 = vunpack.c.l.b16 %v1786
    %v1988 = vunpack.c.h.b16 %v1786
    %v1989 = vunpack.c.l.b16 %v1787
    %v1990 = vunpack.c.h.b16 %v1787
    %v1991 = vunpack.c.l.b16 %v1788
    %v1992 = vunpack.c.h.b16 %v1788
    %v1993 = vpack.c.b16 %v1867, %v1865
    %v1994 = vpack.c.b16 %v1868, %v1866
    %v1995 = vpack.c.b16 %v1871, %v1869
    %v1996 = vpack.c.b16 %v1872, %v1870
    %v1997 = vpack.c.b16 %v1875, %v1873
    %v1998 = vpack.c.b16 %v1876, %v1874
    %v1999 = vpack.c.b16 %v1879, %v1877
    %v2000 = vpack.c.b16 %v1880, %v1878
    %v2001 = vpack.c.b16 %v1883, %v1881
    %v2002 = vpack.c.b16 %v1884, %v1882
    %v2003 = vpack.c.b16 %v1887, %v1885
    %v2004 = vpack.c.b16 %v1888, %v1886
    %v2005 = vpack.c.b16 %v1891, %v1889
    %v2006 = vpack.c.b16 %v1892, %v1890
    %v2007 = vpack.c.b16 %v1895, %v1893
    %v2008 = vpack.c.b16 %v1896, %v1894
    %v2009 = vpack.c.b16 %v1899, %v1897
    %v2010 = vpack.c.b16 %v1900, %v1898
    %v2011 = vpack.c.b16 %v1903, %v1901
    %v2012 = vpack.c.b16 %v1904, %v1902
    %v2013 = vpack.c.b16 %v1907, %v1905
    %v2014 = vpack.c.b16 %v1908, %v1906
    %v2015 = vpack.c.b16 %v1911, %v1909
    %v2016 = vpack.c.b16 %v1912, %v1910
    %v2017 = vpack.c.b16 %v1915, %v1913
    %v2018 = vpack.c.b16 %v1916, %v1914
    %v2019 = vpack.c.b16 %v1919, %v1917
    %v2020 = vpack.c.b16 %v1920, %v1918
    %v2021 = vpack.c.b16 %v1923, %v1921
    %v2022 = vpack.c.b16 %v1924, %v1922
    %v2023 = vpack.c.b16 %v1927, %v1925
    %v2024 = vpack.c.b16 %v1928, %v1926
    %v2025 = vpack.c.b16 %v1931, %v1929
    %v2026 = vpack.c.b16 %v1932, %v1930
    %v2027 = vpack.c.b16 %v1935, %v1933
    %v2028 = vpack.c.b16 %v1936, %v1934
    %v2029 = vpack.c.b16 %v1939, %v1937
    %v2030 = vpack.c.b16 %v1940, %v1938
    %v2031 = vpack.c.b16 %v1943, %v1941
    %v2032 = vpack.c.b16 %v1944, %v1942
    %v2033 = vpack.c.b16 %v1947, %v1945
    %v2034 = vpack.c.b16 %v1948, %v1946
    %v2035 = vpack.c.b16 %v1951, %v1949
    %v2036 = vpack.c.b16 %v1952, %v1950
    %v2037 = vpack.c.b16 %v1955, %v1953
    %v2038 = vpack.c.b16 %v1956, %v1954
    %v2039 = vpack.c.b16 %v1959, %v1957
    %v2040 = vpack.c.b16 %v1960, %v1958
    %v2041 = vpack.c.b16 %v1963, %v1961
    %v2042 = vpack.c.b16 %v1964, %v1962
    %v2043 = vpack.c.b16 %v1967, %v1965
    %v2044 = vpack.c.b16 %v1968, %v1966
    %v2045 = vpack.c.b16 %v1971, %v1969
    %v2046 = vpack.c.b16 %v1972, %v1970
    %v2047 = vpack.c.b16 %v1975, %v1973
    %v2048 = vpack.c.b16 %v1976, %v1974
    %v2049 = vpack.c.b16 %v1979, %v1977
    %v2050 = vpack.c.b16 %v1980, %v1978
    %v2051 = vpack.c.b16 %v1983, %v1981
    %v2052 = vpack.c.b16 %v1984, %v1982
    %v2053 = vpack.c.b16 %v1987, %v1985
    %v2054 = vpack.c.b16 %v1988, %v1986
    %v2055 = vpack.c.b16 %v1991, %v1989
    %v2056 = vpack.c.b16 %v1992, %v1990
    %2121 = vmatprep.subr.bf16.mxu0 %v2008
    %2122 = vmatpush1.bf16.msra.mxu0 %v2007
    %2123 = vmatprep.subr.bf16.mxu0 %v2006
    %2124 = vmatpush1.bf16.msra.mxu0 %v2005
    %2125 = vmatprep.subr.bf16.mxu0 %v2004
    %2126 = vmatpush1.bf16.msra.mxu0 %v2003
    %2127 = vmatprep.subr.bf16.mxu0 %v2002
    %2128 = vmatpush1.bf16.msra.mxu0 %v2001
    %2129 = vmatprep.subr.bf16.mxu0 %v2000
    %2130 = vmatpush1.bf16.msra.mxu0 %v1999
    %2131 = vmatprep.subr.bf16.mxu0 %v1998
    %2132 = vmatpush1.bf16.msra.mxu0 %v1997
    %2133 = vmatprep.subr.bf16.mxu0 %v1996
    %2134 = vmatpush1.bf16.msra.mxu0 %v1995
    %2135 = vmatprep.subr.bf16.mxu0 %v1994
    %2136 = vmatpush1.bf16.msra.mxu0 %v1993
    %2137 = vmatprep.subr.bf16.mxu0 %v2024
    %2138 = vmatpush2.bf16.msra.mxu0 %v2023
    %2139 = vmatprep.subr.bf16.mxu0 %v2022
    %2140 = vmatpush2.bf16.msra.mxu0 %v2021
    %2141 = vmatprep.subr.bf16.mxu0 %v2020
    %2142 = vmatpush2.bf16.msra.mxu0 %v2019
    %2143 = vmatprep.subr.bf16.mxu0 %v2018
    %2144 = vmatpush2.bf16.msra.mxu0 %v2017
    %2145 = vmatprep.subr.bf16.mxu0 %v2016
    %2146 = vmatpush2.bf16.msra.mxu0 %v2015
    %2147 = vmatprep.subr.bf16.mxu0 %v2014
    %2148 = vmatpush2.bf16.msra.mxu0 %v2013
    %2149 = vmatprep.subr.bf16.mxu0 %v2012
    %2150 = vmatpush2.bf16.msra.mxu0 %v2011
    %2151 = vmatprep.subr.bf16.mxu0 %v2010
    %2152 = vmatpush2.bf16.msra.mxu0 %v2009
    %2153 = vmatprep.mubr.bf16.mxu0 %v1722
    %2154 = vmatmul.mubr.bf16.gmra.mxu0 %v1721
    %v2155 = vpop.f32.mrf.mxu0
    %v2156 = vadd.f32 %v1794, %v2155
    %v2157 = vpop.f32.mrf.mxu0
    %v2158 = vadd.f32 %v1798, %v2157
    %v2159 = vpop.f32.mrf.mxu0
    %v2160 = vpop.f32.mrf.mxu0
    %2161 = vdwg.mxu0
    %2162 = vmatprep.subr.bf16.mxu0 %v2040
    %2163 = vmatpush1.bf16.msra.mxu0 %v2039
    %2164 = vmatprep.subr.bf16.mxu0 %v2038
    %2165 = vmatpush1.bf16.msra.mxu0 %v2037
    %2166 = vmatprep.subr.bf16.mxu0 %v2036
    %2167 = vmatpush1.bf16.msra.mxu0 %v2035
    %2168 = vmatprep.subr.bf16.mxu0 %v2034
    %2169 = vmatpush1.bf16.msra.mxu0 %v2033
    %2170 = vmatprep.subr.bf16.mxu0 %v2032
    %2171 = vmatpush1.bf16.msra.mxu0 %v2031
    %2172 = vmatprep.subr.bf16.mxu0 %v2030
    %2173 = vmatpush1.bf16.msra.mxu0 %v2029
    %2174 = vmatprep.subr.bf16.mxu0 %v2028
    %2175 = vmatpush1.bf16.msra.mxu0 %v2027
    %2176 = vmatprep.subr.bf16.mxu0 %v2026
    %2177 = vmatpush1.bf16.msra.mxu0 %v2025
    %2178 = vmatprep.subr.bf16.mxu0 %v2056
    %2179 = vmatpush2.bf16.msra.mxu0 %v2055
    %2180 = vmatprep.subr.bf16.mxu0 %v2054
    %2181 = vmatpush2.bf16.msra.mxu0 %v2053
    %2182 = vmatprep.subr.bf16.mxu0 %v2052
    %2183 = vmatpush2.bf16.msra.mxu0 %v2051
    %2184 = vmatprep.subr.bf16.mxu0 %v2050
    %2185 = vmatpush2.bf16.msra.mxu0 %v2049
    %2186 = vmatprep.subr.bf16.mxu0 %v2048
    %2187 = vmatpush2.bf16.msra.mxu0 %v2047
    %2188 = vmatprep.subr.bf16.mxu0 %v2046
    %2189 = vmatpush2.bf16.msra.mxu0 %v2045
    %2190 = vmatprep.subr.bf16.mxu0 %v2044
    %2191 = vmatpush2.bf16.msra.mxu0 %v2043
    %2192 = vmatprep.subr.bf16.mxu0 %v2042
    %2193 = vmatpush2.bf16.msra.mxu0 %v2041
    %2194 = vmatprep.mubr.bf16.mxu0 %v1724
    %2195 = vmatmul.mubr.bf16.gmra.mxu0 %v1723
    %v2196 = vpop.f32.mrf.mxu0
    %v2197 = vadd.f32 %v2156, %v2196
    %v2198 = vpop.f32.mrf.mxu0
    %v2199 = vadd.f32 %v2158, %v2198
    %v2200 = vpop.f32.mrf.mxu0
    %v2201 = vpop.f32.mrf.mxu0
    %2202 = vdwg.mxu0
    %v2203 = vmax.f32 %v2197, 0.0
    %v2204 = vmax.f32 %v2199, 0.0
    %v2205 = vpack.c.bf16 %v2203, %v2203
    %v2206 = vpack.c.bf16 %v2204, %v2204
    %v2207 = vld [vmem:[#allocation10] sm:$0xf]
    %v2208 = vld [vmem:[#allocation10 + $0x4] sm:$0xf]
    %v2209 = vld [vmem:[#allocation10 + $0x8] sm:$0xf]
    %v2210 = vld [vmem:[#allocation10 + $0xc] sm:$0xf]
    %v2211 = vld [vmem:[#allocation10 + $0x10] sm:$0xf]
    %v2212 = vld [vmem:[#allocation10 + $0x14] sm:$0xf]
    %v2213 = vld [vmem:[#allocation10 + $0x18] sm:$0xf]
    %v2214 = vld [vmem:[#allocation10 + $0x1c] sm:$0xf]
    %v2215 = vld [vmem:[#allocation10 + $0x20] sm:$0xf]
    %v2216 = vld [vmem:[#allocation10 + $0x24] sm:$0xf]
    %v2217 = vld [vmem:[#allocation10 + $0x28] sm:$0xf]
    %v2218 = vld [vmem:[#allocation10 + $0x2c] sm:$0xf]
    %v2219 = vld [vmem:[#allocation10 + $0x30] sm:$0xf]
    %v2220 = vld [vmem:[#allocation10 + $0x34] sm:$0xf]
    %v2221 = vld [vmem:[#allocation10 + $0x38] sm:$0xf]
    %v2222 = vld [vmem:[#allocation10 + $0x3c] sm:$0xf]
    %v2223 = vld [vmem:[#allocation10 + $0x40] sm:$0xf]
    %v2224 = vld [vmem:[#allocation10 + $0x44] sm:$0xf]
    %v2225 = vld [vmem:[#allocation10 + $0x48] sm:$0xf]
    %v2226 = vld [vmem:[#allocation10 + $0x4c] sm:$0xf]
    %v2227 = vld [vmem:[#allocation10 + $0x50] sm:$0xf]
    %v2228 = vld [vmem:[#allocation10 + $0x54] sm:$0xf]
    %v2229 = vld [vmem:[#allocation10 + $0x58] sm:$0xf]
    %v2230 = vld [vmem:[#allocation10 + $0x5c] sm:$0xf]
    %v2231 = vld [vmem:[#allocation10 + $0x60] sm:$0xf]
    %v2232 = vld [vmem:[#allocation10 + $0x64] sm:$0xf]
    %v2233 = vld [vmem:[#allocation10 + $0x68] sm:$0xf]
    %v2234 = vld [vmem:[#allocation10 + $0x6c] sm:$0xf]
    %v2235 = vld [vmem:[#allocation10 + $0x70] sm:$0xf]
    %v2236 = vld [vmem:[#allocation10 + $0x74] sm:$0xf]
    %v2237 = vld [vmem:[#allocation10 + $0x78] sm:$0xf]
    %v2238 = vld [vmem:[#allocation10 + $0x7c] sm:$0xf]
    %v2239 = vld [vmem:[%s7] sm:$0x1]
    %v2241 = vlaneseq
    %v2242 = vshrl.u32 %v2241, 7
    %v2243 = vsub.s32 0, %v2242
    %v2244 = vrot.slane %v2239, %v2243
    %v2278 = vunpack.c.l.b16 %v2207
    %v2279 = vunpack.c.l.b16 %v2208
    %v2280 = vunpack.c.l.b16 %v2209
    %v2281 = vunpack.c.l.b16 %v2210
    %v2282 = vunpack.c.l.b16 %v2211
    %v2283 = vunpack.c.l.b16 %v2212
    %v2284 = vunpack.c.l.b16 %v2213
    %v2285 = vunpack.c.l.b16 %v2214
    %v2286 = vunpack.c.l.b16 %v2215
    %v2287 = vunpack.c.l.b16 %v2216
    %v2288 = vunpack.c.l.b16 %v2217
    %v2289 = vunpack.c.l.b16 %v2218
    %v2290 = vunpack.c.l.b16 %v2219
    %v2291 = vunpack.c.l.b16 %v2220
    %v2292 = vunpack.c.l.b16 %v2221
    %v2293 = vunpack.c.l.b16 %v2222
    %v2294 = vunpack.c.l.b16 %v2223
    %v2295 = vunpack.c.l.b16 %v2224
    %v2296 = vunpack.c.l.b16 %v2225
    %v2297 = vunpack.c.l.b16 %v2226
    %v2298 = vunpack.c.l.b16 %v2227
    %v2299 = vunpack.c.l.b16 %v2228
    %v2300 = vunpack.c.l.b16 %v2229
    %v2301 = vunpack.c.l.b16 %v2230
    %v2302 = vunpack.c.l.b16 %v2231
    %v2303 = vunpack.c.l.b16 %v2232
    %v2304 = vunpack.c.l.b16 %v2233
    %v2305 = vunpack.c.l.b16 %v2234
    %v2306 = vunpack.c.l.b16 %v2235
    %v2307 = vunpack.c.l.b16 %v2236
    %v2308 = vunpack.c.l.b16 %v2237
    %v2309 = vunpack.c.l.b16 %v2238
    %v2310 = vpack.c.b16 %v2279, %v2278
    %v2311 = vpack.c.b16 %v2281, %v2280
    %v2312 = vpack.c.b16 %v2283, %v2282
    %v2313 = vpack.c.b16 %v2285, %v2284
    %v2314 = vpack.c.b16 %v2287, %v2286
    %v2315 = vpack.c.b16 %v2289, %v2288
    %v2316 = vpack.c.b16 %v2291, %v2290
    %v2317 = vpack.c.b16 %v2293, %v2292
    %v2318 = vpack.c.b16 %v2295, %v2294
    %v2319 = vpack.c.b16 %v2297, %v2296
    %v2320 = vpack.c.b16 %v2299, %v2298
    %v2321 = vpack.c.b16 %v2301, %v2300
    %v2322 = vpack.c.b16 %v2303, %v2302
    %v2323 = vpack.c.b16 %v2305, %v2304
    %v2324 = vpack.c.b16 %v2307, %v2306
    %v2325 = vpack.c.b16 %v2309, %v2308
    %2342 = vmatprep.subr.bf16.mxu0 0
    %2343 = vmatpush1.bf16.msra.mxu0 %v2317
    %2344 = vmatprep.subr.bf16.mxu0 0
    %2345 = vmatpush1.bf16.msra.mxu0 %v2316
    %2346 = vmatprep.subr.bf16.mxu0 0
    %2347 = vmatpush1.bf16.msra.mxu0 %v2315
    %2348 = vmatprep.subr.bf16.mxu0 0
    %2349 = vmatpush1.bf16.msra.mxu0 %v2314
    %2350 = vmatprep.subr.bf16.mxu0 0
    %2351 = vmatpush1.bf16.msra.mxu0 %v2313
    %2352 = vmatprep.subr.bf16.mxu0 0
    %2353 = vmatpush1.bf16.msra.mxu0 %v2312
    %2354 = vmatprep.subr.bf16.mxu0 0
    %2355 = vmatpush1.bf16.msra.mxu0 %v2311
    %2356 = vmatprep.subr.bf16.mxu0 0
    %2357 = vmatpush1.bf16.msra.mxu0 %v2310
    %2358 = vmatprep.subr.bf16.mxu0 0
    %2359 = vmatpush2.bf16.msra.mxu0 %v2325
    %2360 = vmatprep.subr.bf16.mxu0 0
    %2361 = vmatpush2.bf16.msra.mxu0 %v2324
    %2362 = vmatprep.subr.bf16.mxu0 0
    %2363 = vmatpush2.bf16.msra.mxu0 %v2323
    %2364 = vmatprep.subr.bf16.mxu0 0
    %2365 = vmatpush2.bf16.msra.mxu0 %v2322
    %2366 = vmatprep.subr.bf16.mxu0 0
    %2367 = vmatpush2.bf16.msra.mxu0 %v2321
    %2368 = vmatprep.subr.bf16.mxu0 0
    %2369 = vmatpush2.bf16.msra.mxu0 %v2320
    %2370 = vmatprep.subr.bf16.mxu0 0
    %2371 = vmatpush2.bf16.msra.mxu0 %v2319
    %2372 = vmatprep.subr.bf16.mxu0 0
    %2373 = vmatpush2.bf16.msra.mxu0 %v2318
    %2374 = vmatprep.mubr.bf16.mxu0 %v2206
    %2375 = vmatmul.mubr.bf16.gmra.mxu0 %v2205
    %v2376 = vpop.f32.mrf.mxu0
    %v2377 = vadd.f32 %v2244, %v2376
    %v2378 = vpop.f32.mrf.mxu0
    %v2379 = vpop.f32.mrf.mxu0
    %v2380 = vpop.f32.mrf.mxu0
    %2381 = vdwg.mxu0
    %v2382 = vmax.f32 %v2377, 0.0
    %v2383 = vpack.c.bf16 %v2382, %v2382
    %v2384 = vld [vmem:[#allocation11] sm:$0xf]
    %v2385 = vld [vmem:[#allocation11 + $0x4] sm:$0xf]
    %v2386 = vld [vmem:[#allocation11 + $0x8] sm:$0xf]
    %v2387 = vld [vmem:[#allocation11 + $0xc] sm:$0xf]
    %v2388 = vld [vmem:[#allocation11 + $0x10] sm:$0xf]
    %v2389 = vld [vmem:[#allocation11 + $0x14] sm:$0xf]
    %v2390 = vld [vmem:[#allocation11 + $0x18] sm:$0xf]
    %v2391 = vld [vmem:[#allocation11 + $0x1c] sm:$0xf]
    %v2392 = vld [vmem:[#allocation11 + $0x20] sm:$0xf]
    %v2393 = vld [vmem:[#allocation11 + $0x24] sm:$0xf]
    %v2394 = vld [vmem:[#allocation11 + $0x28] sm:$0xf]
    %v2395 = vld [vmem:[#allocation11 + $0x2c] sm:$0xf]
    %v2396 = vld [vmem:[#allocation11 + $0x30] sm:$0xf]
    %v2397 = vld [vmem:[#allocation11 + $0x34] sm:$0xf]
    %v2398 = vld [vmem:[#allocation11 + $0x38] sm:$0xf]
    %v2399 = vld [vmem:[#allocation11 + $0x3c] sm:$0xf]
    %v2400 = vld [vmem:[%s9] sm:$0x1]
    %v2402 = vlaneseq
    %v2403 = vshrl.u32 %v2402, 7
    %v2404 = vsub.s32 0, %v2403
    %v2405 = vrot.slane %v2400, %v2404
    %v2423 = vunpack.c.l.b16 %v2384
    %v2424 = vunpack.c.l.b16 %v2385
    %v2425 = vunpack.c.l.b16 %v2386
    %v2426 = vunpack.c.l.b16 %v2387
    %v2427 = vunpack.c.l.b16 %v2388
    %v2428 = vunpack.c.l.b16 %v2389
    %v2429 = vunpack.c.l.b16 %v2390
    %v2430 = vunpack.c.l.b16 %v2391
    %v2431 = vunpack.c.l.b16 %v2392
    %v2432 = vunpack.c.l.b16 %v2393
    %v2433 = vunpack.c.l.b16 %v2394
    %v2434 = vunpack.c.l.b16 %v2395
    %v2435 = vunpack.c.l.b16 %v2396
    %v2436 = vunpack.c.l.b16 %v2397
    %v2437 = vunpack.c.l.b16 %v2398
    %v2438 = vunpack.c.l.b16 %v2399
    %v2439 = vpack.c.b16 %v2424, %v2423
    %v2440 = vpack.c.b16 %v2426, %v2425
    %v2441 = vpack.c.b16 %v2428, %v2427
    %v2442 = vpack.c.b16 %v2430, %v2429
    %v2443 = vpack.c.b16 %v2432, %v2431
    %v2444 = vpack.c.b16 %v2434, %v2433
    %v2445 = vpack.c.b16 %v2436, %v2435
    %v2446 = vpack.c.b16 %v2438, %v2437
    %2455 = vmatprep.subr.bf16.mxu0 0
    %2456 = vmatpush1.bf16.msra.mxu0 %v2446
    %2457 = vmatprep.subr.bf16.mxu0 0
    %2458 = vmatpush1.bf16.msra.mxu0 %v2445
    %2459 = vmatprep.subr.bf16.mxu0 0
    %2460 = vmatpush1.bf16.msra.mxu0 %v2444
    %2461 = vmatprep.subr.bf16.mxu0 0
    %2462 = vmatpush1.bf16.msra.mxu0 %v2443
    %2463 = vmatprep.subr.bf16.mxu0 0
    %2464 = vmatpush1.bf16.msra.mxu0 %v2442
    %2465 = vmatprep.subr.bf16.mxu0 0
    %2466 = vmatpush1.bf16.msra.mxu0 %v2441
    %2467 = vmatprep.subr.bf16.mxu0 0
    %2468 = vmatpush1.bf16.msra.mxu0 %v2440
    %2469 = vmatprep.subr.bf16.mxu0 0
    %2470 = vmatpush1.bf16.msra.mxu0 %v2439
    %2471 = vmatprep.subr.bf16.mxu0 0
    %2472 = vmatpush2.bf16.msra.mxu0 0
    %2473 = vmatprep.subr.bf16.mxu0 0
    %2474 = vmatpush2.bf16.msra.mxu0 0
    %2475 = vmatprep.subr.bf16.mxu0 0
    %2476 = vmatpush2.bf16.msra.mxu0 0
    %2477 = vmatprep.subr.bf16.mxu0 0
    %2478 = vmatpush2.bf16.msra.mxu0 0
    %2479 = vmatprep.subr.bf16.mxu0 0
    %2480 = vmatpush2.bf16.msra.mxu0 0
    %2481 = vmatprep.subr.bf16.mxu0 0
    %2482 = vmatpush2.bf16.msra.mxu0 0
    %2483 = vmatprep.subr.bf16.mxu0 0
    %2484 = vmatpush2.bf16.msra.mxu0 0
    %2485 = vmatprep.subr.bf16.mxu0 0
    %2486 = vmatpush2.bf16.msra.mxu0 0
    %2487 = vmatprep.mubr.bf16.mxu0 0
    %2488 = vmatmul.mubr.bf16.gmra.mxu0 %v2383
    %v2489 = vpop.f32.mrf.mxu0
    %v2490 = vadd.f32 %v2405, %v2489
    %v2491 = vpop.f32.mrf.mxu0
    %v2492 = vpop.f32.mrf.mxu0
    %v2493 = vpop.f32.mrf.mxu0
    %2494 = vdwg.mxu0
    %2495 = vst [vmem:[#allocation13] sm:$0xff] %v2490
    // Predicated region
    $region66: #{tpu_custom_call.1} parent=1 // pred_check
      _
    $region67: #{tpu_custom_call.1} parent=1 // pred_check_branch
      %2497 = sbr.rel (0) target = $region69
    $region68: #{tpu_custom_call.1} parent=1 // pred_region
      %s2499 = ssub.s32 128, 128
      %2500 = vsyncadd [#allocation4], %s2499
      %s2502 = sshll.u32 [#allocation13], 4
      %s2503 = int_to_ptr.vmem [resolvable:$true] %s2502
      %2505 = dma.vmem_to_hbm [thread:$0]  %s2503, 128, %s10, [#allocation4]
    $region69: #{tpu_custom_call.1} parent=1 // pred_fallthru
      _
    // Predicated region
    $region70: #{tpu_custom_call.1} parent=1 // pred_check
      _
    $region71: #{tpu_custom_call.1} parent=1 // pred_check_branch
      %2507 = sbr.rel (0) target = $region73
    $region72: #{tpu_custom_call.1} parent=1 // pred_region
      %2508 = dma.done [#allocation4], 128
    $region73: #{tpu_custom_call.1} parent=1 // pred_fallthru
      _
    %2509 = vsyncpa [#allocation3], 1
    %2510 = vsyncpa [#allocation6], 1
    %2511 = vsyncpa [#allocation9], 1
    %2512 = vsyncpa [#allocation12], 1
    %2513 = vsyncpa [#allocation4], 1

</llo_original>
